<compile_context>
chip_gen: v7x
topology: tpu7x:2x2x1
jax: 0.10.0
libtpu: 0.0.40
codegen_flags: <defaults>
</compile_context>

<pallas_src>
import jax
import jax.numpy as jnp
from jax.experimental import pallas as pl
from jax.experimental.pallas import tpu as pltpu

# Model hyper-parameters (matching the PyTorch __init__ defaults, small shapes for demo)
INPUT_SIZE = 1
HIDDEN_SIZE = 64
NUM_LAYERS = 2
OUTPUT_SIZE = 1
BATCH = 2
SEQ = 8


def lstm_forward_kernel(x_ref,        # (T, B)    time-major input, feature axis squeezed, f32
                        wih0_ref,     # (1, 4H)   layer-0 input weights row (g cols x2), f32
                        whh0_ref,     # (H, 4H)   layer-0 recurrent weights (transposed, g x2), bf16
                        b0_ref,       # (1, 4H)   b_ih0 + b_hh0 (g slice x2), f32
                        wih1_ref,     # (H, 4H)   layer-1 input weights (transposed, g x2), bf16
                        whh1_ref,     # (H, 4H)   layer-1 recurrent weights (transposed, g x2), bf16
                        b1_ref,       # (1, 4H)   b_ih1 + b_hh1 (g slice x2), f32
                        fcw_ref,      # (1, H)    fc weight (output_size == 1), f32
                        fcb_ref,      # (1, 1)    fc bias, f32
                        out_ref):     # (B, 1)
    x_tb = x_ref[...]                                    # (T, B) f32
    T, B = x_tb.shape
    H = whh0_ref.shape[0]

    whh0 = whh0_ref[...]                                 # (H, 4H) bf16
    wih1 = wih1_ref[...]                                 # (H, 4H) bf16
    whh1 = whh1_ref[...]                                 # (H, 4H) bf16

    # --- Hoisted: layer-0 input projection + bias, computed once on the VPU (f32). ---
    # input_size == 1  =>  x_t @ W_ih0^T is just scalar * row; no MXU work on the serial path.
    xw0_all = (x_tb[:, :, None] * wih0_ref[...][None, :, :]
               + b0_ref[...][None, :, :])                # (T, B, 4H) f32

    # --- Hoisted: layer-1 bias broadcast, reused by every unrolled step. ---
    b1_b = jnp.broadcast_to(b1_ref[...], (B, 4 * H))     # (B, 4H) f32

    c0 = jnp.zeros((B, H), jnp.float32)
    c1 = jnp.zeros((B, H), jnp.float32)
    h1 = jnp.zeros((B, H), jnp.float32)
    # bf16 copies of the hidden states feed the MXU; f32 copies feed the VPU/EUP math.
    h0_b = jnp.zeros((B, H), jnp.bfloat16)
    h1_b = jnp.zeros((B, H), jnp.bfloat16)

    def activate(gates, c_prev):
        # PyTorch gate order [i, f, g, o].  One wide sigmoid over the whole 4H block; the
        # g-gate pre-activations were scaled by 2 in the packed weights, so
        # tanh(pre_g) == 2*sigmoid(2*pre_g) - 1 falls out of the same sigmoid for free.
        sig = jax.nn.sigmoid(gates)                      # (B, 4H) f32
        i = sig[:, 0:H]
        f = sig[:, H:2 * H]
        g = 2.0 * sig[:, 2 * H:3 * H] - 1.0              # == tanh of the unscaled g gate
        o = sig[:, 3 * H:4 * H]
        c_new = f * c_prev + i * g
        h_new = o * jnp.tanh(c_new)
        return h_new, c_new

    # Static (unrolled) time loop — SEQ is small.  Interleaving the two layers per timestep
    # is mathematically identical to running layer 0 fully then layer 1, and exposes the
    # layer0(t+1) / layer1(t) overlap to the scheduler.
    for t in range(T):
        # Layer 0: only the K=64 recurrent matmul remains on the serial critical path.
        gates0 = xw0_all[t] + jnp.dot(h0_b, whh0, preferred_element_type=jnp.float32)
        h0, c0 = activate(gates0, c0)
        h0_b = h0.astype(jnp.bfloat16)

        # Layer 1: two independent K=64 matmuls (no concat); the whh1 half depends only on
        # h1(t-1) and can be issued ahead of layer-0's activation for this step.
        gates1 = (jnp.dot(h0_b, wih1, preferred_element_type=jnp.float32)
                  + jnp.dot(h1_b, whh1, preferred_element_type=jnp.float32)
                  + b1_b)
        h1, c1 = activate(gates1, c1)
        h1_b = h1.astype(jnp.bfloat16)
        # TODO(synk): inter-layer dropout (p=0.2) and self.dropout are training-only;
        # the inference forward is identity, so nothing is applied here.

    # Final Linear (H -> 1): VPU multiply + lane reduce instead of an N=1 MXU matmul.
    # last_output == h1 after the final timestep.
    out = jnp.sum(h1 * fcw_ref[...], axis=-1, keepdims=True) + fcb_ref[...]   # (B, 1)
    out_ref[...] = out.astype(out_ref.dtype)


def init_params(key, input_size=INPUT_SIZE, hidden_size=HIDDEN_SIZE,
                output_size=OUTPUT_SIZE):
    """PyTorch-style uniform(-1/sqrt(H), 1/sqrt(H)) init, PyTorch layout (for the reference)."""
    H = hidden_size
    k = 1.0 / jnp.sqrt(jnp.float32(H))
    keys = jax.random.split(key, 10)

    def u(kk, shape):
        return jax.random.uniform(kk, shape, jnp.float32, -k, k)

    return {
        "w_ih0": u(keys[0], (4 * H, input_size)),        # (4H, I)
        "w_hh0": u(keys[1], (4 * H, H)),
        "b_ih0": u(keys[2], (4 * H,)),
        "b_hh0": u(keys[3], (4 * H,)),
        "w_ih1": u(keys[4], (4 * H, H)),
        "w_hh1": u(keys[5], (4 * H, H)),
        "b_ih1": u(keys[6], (4 * H,)),
        "b_hh1": u(keys[7], (4 * H,)),
        "fc_w": u(keys[8], (output_size, H)),            # (O, H)
        "fc_b": u(keys[9], (output_size,)),
    }


def pack_params(tp):
    """Repack PyTorch-layout params into the kernel layout:
    transposed gate weights, summed biases, g-gate columns (2H:3H) scaled by 2
    (tanh-into-sigmoid fold), recurrent/MXU weights cast to bf16."""
    H = tp["w_hh0"].shape[1]
    O = tp["fc_w"].shape[0]

    def scale_g_cols(w_t):                               # w_t: (K, 4H)
        return w_t.at[:, 2 * H:3 * H].multiply(2.0)

    def scale_g_vec(b):                                  # b: (4H,)
        return b.at[2 * H:3 * H].multiply(2.0)

    return {
        "w_ih0_row": scale_g_cols(tp["w_ih0"].T),                              # (1, 4H) f32 (VPU)
        "w_hh0_t": scale_g_cols(tp["w_hh0"].T).astype(jnp.bfloat16),           # (H, 4H) bf16
        "b0": scale_g_vec(tp["b_ih0"] + tp["b_hh0"]).reshape(1, 4 * H),        # (1, 4H) f32
        "w_ih1_t": scale_g_cols(tp["w_ih1"].T).astype(jnp.bfloat16),           # (H, 4H) bf16
        "w_hh1_t": scale_g_cols(tp["w_hh1"].T).astype(jnp.bfloat16),           # (H, 4H) bf16
        "b1": scale_g_vec(tp["b_ih1"] + tp["b_hh1"]).reshape(1, 4 * H),        # (1, 4H) f32
        "fc_w": tp["fc_w"],                                                    # (1, H)  f32
        "fc_b": tp["fc_b"].reshape(1, O),                                      # (1, 1)  f32
    }


def lstm_model_forward(x, packed):
    """Pallas wrapper.

    Layout plumbing done here (not in the kernel): squeeze the size-1 feature axis, lay the
    input out time-major / lane-dense as (T, B), and pad batch to a full 8-sublane tile.
    The whole problem (< 1 MiB) fits VMEM, so a single grid-less call.
    """
    B, T, I = x.shape
    assert I == 1, "kernel specializes the module's input_size == 1 case"
    H = packed["w_hh0_t"].shape[0]
    O = packed["fc_w"].shape[0]
    assert O == 1, "final Linear implemented as a lane reduce (output_size == 1)"

    B_pad = max(8, ((B + 7) // 8) * 8)                   # fill all 8 sublanes
    x_tb = jnp.transpose(x[:, :, 0]).astype(jnp.float32)  # (T, B), lane-dense
    if B_pad != B:
        x_tb = jnp.pad(x_tb, ((0, 0), (0, B_pad - B)))

    vmem = pl.BlockSpec(memory_space=pltpu.MemorySpace.VMEM)
    out = pl.pallas_call(
        lstm_forward_kernel,
        out_shape=jax.ShapeDtypeStruct((B_pad, O), jnp.float32),
        in_specs=[vmem] * 9,
        out_specs=vmem,
    )(x_tb,
      packed["w_ih0_row"], packed["w_hh0_t"], packed["b0"],
      packed["w_ih1_t"], packed["w_hh1_t"], packed["b1"],
      packed["fc_w"], packed["fc_b"])
    return out[:B]


def _reference_forward(x, tp):
    """Pure-JAX f32 reference mirroring PyTorch nn.LSTM(batch_first) + Linear."""
    B = x.shape[0]
    H = tp["w_hh0"].shape[1]

    h0 = jnp.zeros((B, H)); c0 = jnp.zeros((B, H))
    h1 = jnp.zeros((B, H)); c1 = jnp.zeros((B, H))

    def cell(xt, h, c, w_ih, w_hh, b_ih, b_hh):
        g = xt @ w_ih.T + h @ w_hh.T + b_ih + b_hh
        i = jax.nn.sigmoid(g[:, :H]); f = jax.nn.sigmoid(g[:, H:2 * H])
        gg = jnp.tanh(g[:, 2 * H:3 * H]); o = jax.nn.sigmoid(g[:, 3 * H:])
        c = f * c + i * gg
        return o * jnp.tanh(c), c

    for t in range(x.shape[1]):
        h0, c0 = cell(x[:, t, :], h0, c0, tp["w_ih0"], tp["w_hh0"], tp["b_ih0"], tp["b_hh0"])
        h1, c1 = cell(h0, h1, c1, tp["w_ih1"], tp["w_hh1"], tp["b_ih1"], tp["b_hh1"])
    return h1 @ tp["fc_w"].T + tp["fc_b"]


if __name__ == "__main__":
    key = jax.random.PRNGKey(0)
    k_param, k_x = jax.random.split(key)

    torch_params = init_params(k_param)
    packed = pack_params(torch_params)
    x = jax.random.normal(k_x, (BATCH, SEQ, INPUT_SIZE), jnp.float32)

    out = lstm_model_forward(x, packed)
    out = jax.block_until_ready(out)

    ref = _reference_forward(x, torch_params)
    assert out.shape == (BATCH, OUTPUT_SIZE), out.shape
    # bf16 MXU operands in a 2-layer, 8-step recurrence -> tolerance loosened vs the f32 kernel.
    assert jnp.allclose(out, ref, atol=2e-2, rtol=2e-2), (out, ref)

    print("KERNEL_OK")
</pallas_src>

<mosaic_0001>
module attributes {stable_mosaic.version = 11 : i64} {
  func.func @lstm_forward_kernel(%arg0: memref<8x8xf32, #tpu.memory_space<vmem>>, %arg1: memref<1x256xf32, #tpu.memory_space<vmem>>, %arg2: memref<64x256xbf16, #tpu.memory_space<vmem>>, %arg3: memref<1x256xf32, #tpu.memory_space<vmem>>, %arg4: memref<64x256xbf16, #tpu.memory_space<vmem>>, %arg5: memref<64x256xbf16, #tpu.memory_space<vmem>>, %arg6: memref<1x256xf32, #tpu.memory_space<vmem>>, %arg7: memref<1x64xf32, #tpu.memory_space<vmem>>, %arg8: memref<1x1xf32, #tpu.memory_space<vmem>>, %arg9: memref<8x1xf32, #tpu.memory_space<vmem>>) attributes {dimension_semantics = [], scalar_prefetch = 0 : i64, scratch_operands = 0 : i64, tpu.core_type = #tpu.core_type<tc>} {
    %c0 = arith.constant 0 : index
    %c0_0 = arith.constant 0 : index
    %0 = vector.load %arg0[%c0, %c0_0] : memref<8x8xf32, #tpu.memory_space<vmem>>, vector<8x8xf32>
    %c0_1 = arith.constant 0 : index
    %c0_2 = arith.constant 0 : index
    %1 = vector.load %arg2[%c0_1, %c0_2] : memref<64x256xbf16, #tpu.memory_space<vmem>>, vector<64x256xbf16>
    %c0_3 = arith.constant 0 : index
    %c0_4 = arith.constant 0 : index
    %2 = vector.load %arg4[%c0_3, %c0_4] : memref<64x256xbf16, #tpu.memory_space<vmem>>, vector<64x256xbf16>
    %c0_5 = arith.constant 0 : index
    %c0_6 = arith.constant 0 : index
    %3 = vector.load %arg5[%c0_5, %c0_6] : memref<64x256xbf16, #tpu.memory_space<vmem>>, vector<64x256xbf16>
    %4 = vector.shape_cast %0 : vector<8x8xf32> to vector<8x8x1xf32>
    %c0_7 = arith.constant 0 : index
    %c0_8 = arith.constant 0 : index
    %5 = vector.load %arg1[%c0_7, %c0_8] : memref<1x256xf32, #tpu.memory_space<vmem>>, vector<1x256xf32>
    %6 = vector.shape_cast %5 : vector<1x256xf32> to vector<1x1x256xf32>
    %7 = vector.broadcast %4 : vector<8x8x1xf32> to vector<8x8x256xf32>
    %8 = vector.broadcast %6 : vector<1x1x256xf32> to vector<8x8x256xf32>
    %9 = arith.mulf %7, %8 : vector<8x8x256xf32>
    %c0_9 = arith.constant 0 : index
    %c0_10 = arith.constant 0 : index
    %10 = vector.load %arg3[%c0_9, %c0_10] : memref<1x256xf32, #tpu.memory_space<vmem>>, vector<1x256xf32>
    %11 = vector.shape_cast %10 : vector<1x256xf32> to vector<1x1x256xf32>
    %12 = vector.broadcast %11 : vector<1x1x256xf32> to vector<8x8x256xf32>
    %13 = arith.addf %9, %12 : vector<8x8x256xf32>
    %c0_11 = arith.constant 0 : index
    %c0_12 = arith.constant 0 : index
    %14 = vector.load %arg6[%c0_11, %c0_12] : memref<1x256xf32, #tpu.memory_space<vmem>>, vector<1x256xf32>
    %15 = vector.shape_cast %14 : vector<1x256xf32> to vector<1x256xf32>
    %16 = vector.broadcast %15 : vector<1x256xf32> to vector<8x256xf32>
    %cst = arith.constant 0.000000e+00 : f32
    %17 = vector.broadcast %cst : f32 to vector<8x64xf32>
    %cst_13 = arith.constant 0.000000e+00 : f32
    %18 = vector.broadcast %cst_13 : f32 to vector<8x64xf32>
    %cst_14 = arith.constant 0.000000e+00 : bf16
    %19 = vector.broadcast %cst_14 : bf16 to vector<8x64xbf16>
    %cst_15 = arith.constant 0.000000e+00 : bf16
    %20 = vector.broadcast %cst_15 : bf16 to vector<8x64xbf16>
    %21 = vector.extract_strided_slice %13 {offsets = [0, 0, 0], sizes = [1, 8, 256], strides = [1, 1, 1]} : vector<8x8x256xf32> to vector<1x8x256xf32>
    %22 = vector.shape_cast %21 : vector<1x8x256xf32> to vector<8x256xf32>
    %cst_16 = arith.constant dense<0.000000e+00> : vector<8x256xf32>
    %23 = tpu.matmul %19, %1, %cst_16 {dimension_numbers = #tpu.dot_dimension_numbers<[1], [0], [0], [1], [0, 0, 1, 1], [], []>} : vector<8x64xbf16>, vector<64x256xbf16>, vector<8x256xf32> -> vector<8x256xf32>
    %24 = arith.addf %22, %23 : vector<8x256xf32>
    %25 = arith.negf %24 : vector<8x256xf32>
    %26 = math.exp %25 : vector<8x256xf32>
    %cst_17 = arith.constant 1.000000e+00 : f32
    %27 = vector.broadcast %cst_17 : f32 to vector<8x256xf32>
    %28 = arith.addf %27, %26 : vector<8x256xf32>
    %29 = arith.divf %27, %28 : vector<8x256xf32>
    %30 = vector.extract_strided_slice %29 {offsets = [0, 0], sizes = [8, 64], strides = [1, 1]} : vector<8x256xf32> to vector<8x64xf32>
    %31 = vector.extract_strided_slice %29 {offsets = [0, 64], sizes = [8, 64], strides = [1, 1]} : vector<8x256xf32> to vector<8x64xf32>
    %32 = vector.extract_strided_slice %29 {offsets = [0, 128], sizes = [8, 64], strides = [1, 1]} : vector<8x256xf32> to vector<8x64xf32>
    %cst_18 = arith.constant 2.000000e+00 : f32
    %33 = vector.broadcast %cst_18 : f32 to vector<8x64xf32>
    %34 = arith.mulf %33, %32 : vector<8x64xf32>
    %cst_19 = arith.constant 1.000000e+00 : f32
    %35 = vector.broadcast %cst_19 : f32 to vector<8x64xf32>
    %36 = arith.subf %34, %35 : vector<8x64xf32>
    %37 = vector.extract_strided_slice %29 {offsets = [0, 192], sizes = [8, 64], strides = [1, 1]} : vector<8x256xf32> to vector<8x64xf32>
    %38 = arith.mulf %31, %17 : vector<8x64xf32>
    %39 = arith.mulf %30, %36 : vector<8x64xf32>
    %40 = arith.addf %38, %39 : vector<8x64xf32>
    %41 = math.tanh %40 : vector<8x64xf32>
    %42 = arith.mulf %37, %41 : vector<8x64xf32>
    %43 = arith.truncf %42 : vector<8x64xf32> to vector<8x64xbf16>
    %cst_20 = arith.constant dense<0.000000e+00> : vector<8x256xf32>
    %44 = tpu.matmul %43, %2, %cst_20 {dimension_numbers = #tpu.dot_dimension_numbers<[1], [0], [0], [1], [0, 0, 1, 1], [], []>} : vector<8x64xbf16>, vector<64x256xbf16>, vector<8x256xf32> -> vector<8x256xf32>
    %cst_21 = arith.constant dense<0.000000e+00> : vector<8x256xf32>
    %45 = tpu.matmul %20, %3, %cst_21 {dimension_numbers = #tpu.dot_dimension_numbers<[1], [0], [0], [1], [0, 0, 1, 1], [], []>} : vector<8x64xbf16>, vector<64x256xbf16>, vector<8x256xf32> -> vector<8x256xf32>
    %46 = arith.addf %44, %45 : vector<8x256xf32>
    %47 = arith.addf %46, %16 : vector<8x256xf32>
    %48 = arith.negf %47 : vector<8x256xf32>
    %49 = math.exp %48 : vector<8x256xf32>
    %cst_22 = arith.constant 1.000000e+00 : f32
    %50 = vector.broadcast %cst_22 : f32 to vector<8x256xf32>
    %51 = arith.addf %50, %49 : vector<8x256xf32>
    %52 = arith.divf %50, %51 : vector<8x256xf32>
    %53 = vector.extract_strided_slice %52 {offsets = [0, 0], sizes = [8, 64], strides = [1, 1]} : vector<8x256xf32> to vector<8x64xf32>
    %54 = vector.extract_strided_slice %52 {offsets = [0, 64], sizes = [8, 64], strides = [1, 1]} : vector<8x256xf32> to vector<8x64xf32>
    %55 = vector.extract_strided_slice %52 {offsets = [0, 128], sizes = [8, 64], strides = [1, 1]} : vector<8x256xf32> to vector<8x64xf32>
    %cst_23 = arith.constant 2.000000e+00 : f32
    %56 = vector.broadcast %cst_23 : f32 to vector<8x64xf32>
    %57 = arith.mulf %56, %55 : vector<8x64xf32>
    %cst_24 = arith.constant 1.000000e+00 : f32
    %58 = vector.broadcast %cst_24 : f32 to vector<8x64xf32>
    %59 = arith.subf %57, %58 : vector<8x64xf32>
    %60 = vector.extract_strided_slice %52 {offsets = [0, 192], sizes = [8, 64], strides = [1, 1]} : vector<8x256xf32> to vector<8x64xf32>
    %61 = arith.mulf %54, %18 : vector<8x64xf32>
    %62 = arith.mulf %53, %59 : vector<8x64xf32>
    %63 = arith.addf %61, %62 : vector<8x64xf32>
    %64 = math.tanh %63 : vector<8x64xf32>
    %65 = arith.mulf %60, %64 : vector<8x64xf32>
    %66 = arith.truncf %65 : vector<8x64xf32> to vector<8x64xbf16>
    %67 = vector.extract_strided_slice %13 {offsets = [1, 0, 0], sizes = [1, 8, 256], strides = [1, 1, 1]} : vector<8x8x256xf32> to vector<1x8x256xf32>
    %68 = vector.shape_cast %67 : vector<1x8x256xf32> to vector<8x256xf32>
    %cst_25 = arith.constant dense<0.000000e+00> : vector<8x256xf32>
    %69 = tpu.matmul %43, %1, %cst_25 {dimension_numbers = #tpu.dot_dimension_numbers<[1], [0], [0], [1], [0, 0, 1, 1], [], []>} : vector<8x64xbf16>, vector<64x256xbf16>, vector<8x256xf32> -> vector<8x256xf32>
    %70 = arith.addf %68, %69 : vector<8x256xf32>
    %71 = arith.negf %70 : vector<8x256xf32>
    %72 = math.exp %71 : vector<8x256xf32>
    %cst_26 = arith.constant 1.000000e+00 : f32
    %73 = vector.broadcast %cst_26 : f32 to vector<8x256xf32>
    %74 = arith.addf %73, %72 : vector<8x256xf32>
    %75 = arith.divf %73, %74 : vector<8x256xf32>
    %76 = vector.extract_strided_slice %75 {offsets = [0, 0], sizes = [8, 64], strides = [1, 1]} : vector<8x256xf32> to vector<8x64xf32>
    %77 = vector.extract_strided_slice %75 {offsets = [0, 64], sizes = [8, 64], strides = [1, 1]} : vector<8x256xf32> to vector<8x64xf32>
    %78 = vector.extract_strided_slice %75 {offsets = [0, 128], sizes = [8, 64], strides = [1, 1]} : vector<8x256xf32> to vector<8x64xf32>
    %cst_27 = arith.constant 2.000000e+00 : f32
    %79 = vector.broadcast %cst_27 : f32 to vector<8x64xf32>
    %80 = arith.mulf %79, %78 : vector<8x64xf32>
    %cst_28 = arith.constant 1.000000e+00 : f32
    %81 = vector.broadcast %cst_28 : f32 to vector<8x64xf32>
    %82 = arith.subf %80, %81 : vector<8x64xf32>
    %83 = vector.extract_strided_slice %75 {offsets = [0, 192], sizes = [8, 64], strides = [1, 1]} : vector<8x256xf32> to vector<8x64xf32>
    %84 = arith.mulf %77, %40 : vector<8x64xf32>
    %85 = arith.mulf %76, %82 : vector<8x64xf32>
    %86 = arith.addf %84, %85 : vector<8x64xf32>
    %87 = math.tanh %86 : vector<8x64xf32>
    %88 = arith.mulf %83, %87 : vector<8x64xf32>
    %89 = arith.truncf %88 : vector<8x64xf32> to vector<8x64xbf16>
    %cst_29 = arith.constant dense<0.000000e+00> : vector<8x256xf32>
    %90 = tpu.matmul %89, %2, %cst_29 {dimension_numbers = #tpu.dot_dimension_numbers<[1], [0], [0], [1], [0, 0, 1, 1], [], []>} : vector<8x64xbf16>, vector<64x256xbf16>, vector<8x256xf32> -> vector<8x256xf32>
    %cst_30 = arith.constant dense<0.000000e+00> : vector<8x256xf32>
    %91 = tpu.matmul %66, %3, %cst_30 {dimension_numbers = #tpu.dot_dimension_numbers<[1], [0], [0], [1], [0, 0, 1, 1], [], []>} : vector<8x64xbf16>, vector<64x256xbf16>, vector<8x256xf32> -> vector<8x256xf32>
    %92 = arith.addf %90, %91 : vector<8x256xf32>
    %93 = arith.addf %92, %16 : vector<8x256xf32>
    %94 = arith.negf %93 : vector<8x256xf32>
    %95 = math.exp %94 : vector<8x256xf32>
    %cst_31 = arith.constant 1.000000e+00 : f32
    %96 = vector.broadcast %cst_31 : f32 to vector<8x256xf32>
    %97 = arith.addf %96, %95 : vector<8x256xf32>
    %98 = arith.divf %96, %97 : vector<8x256xf32>
    %99 = vector.extract_strided_slice %98 {offsets = [0, 0], sizes = [8, 64], strides = [1, 1]} : vector<8x256xf32> to vector<8x64xf32>
    %100 = vector.extract_strided_slice %98 {offsets = [0, 64], sizes = [8, 64], strides = [1, 1]} : vector<8x256xf32> to vector<8x64xf32>
    %101 = vector.extract_strided_slice %98 {offsets = [0, 128], sizes = [8, 64], strides = [1, 1]} : vector<8x256xf32> to vector<8x64xf32>
    %cst_32 = arith.constant 2.000000e+00 : f32
    %102 = vector.broadcast %cst_32 : f32 to vector<8x64xf32>
    %103 = arith.mulf %102, %101 : vector<8x64xf32>
    %cst_33 = arith.constant 1.000000e+00 : f32
    %104 = vector.broadcast %cst_33 : f32 to vector<8x64xf32>
    %105 = arith.subf %103, %104 : vector<8x64xf32>
    %106 = vector.extract_strided_slice %98 {offsets = [0, 192], sizes = [8, 64], strides = [1, 1]} : vector<8x256xf32> to vector<8x64xf32>
    %107 = arith.mulf %100, %63 : vector<8x64xf32>
    %108 = arith.mulf %99, %105 : vector<8x64xf32>
    %109 = arith.addf %107, %108 : vector<8x64xf32>
    %110 = math.tanh %109 : vector<8x64xf32>
    %111 = arith.mulf %106, %110 : vector<8x64xf32>
    %112 = arith.truncf %111 : vector<8x64xf32> to vector<8x64xbf16>
    %113 = vector.extract_strided_slice %13 {offsets = [2, 0, 0], sizes = [1, 8, 256], strides = [1, 1, 1]} : vector<8x8x256xf32> to vector<1x8x256xf32>
    %114 = vector.shape_cast %113 : vector<1x8x256xf32> to vector<8x256xf32>
    %cst_34 = arith.constant dense<0.000000e+00> : vector<8x256xf32>
    %115 = tpu.matmul %89, %1, %cst_34 {dimension_numbers = #tpu.dot_dimension_numbers<[1], [0], [0], [1], [0, 0, 1, 1], [], []>} : vector<8x64xbf16>, vector<64x256xbf16>, vector<8x256xf32> -> vector<8x256xf32>
    %116 = arith.addf %114, %115 : vector<8x256xf32>
    %117 = arith.negf %116 : vector<8x256xf32>
    %118 = math.exp %117 : vector<8x256xf32>
    %cst_35 = arith.constant 1.000000e+00 : f32
    %119 = vector.broadcast %cst_35 : f32 to vector<8x256xf32>
    %120 = arith.addf %119, %118 : vector<8x256xf32>
    %121 = arith.divf %119, %120 : vector<8x256xf32>
    %122 = vector.extract_strided_slice %121 {offsets = [0, 0], sizes = [8, 64], strides = [1, 1]} : vector<8x256xf32> to vector<8x64xf32>
    %123 = vector.extract_strided_slice %121 {offsets = [0, 64], sizes = [8, 64], strides = [1, 1]} : vector<8x256xf32> to vector<8x64xf32>
    %124 = vector.extract_strided_slice %121 {offsets = [0, 128], sizes = [8, 64], strides = [1, 1]} : vector<8x256xf32> to vector<8x64xf32>
    %cst_36 = arith.constant 2.000000e+00 : f32
    %125 = vector.broadcast %cst_36 : f32 to vector<8x64xf32>
    %126 = arith.mulf %125, %124 : vector<8x64xf32>
    %cst_37 = arith.constant 1.000000e+00 : f32
    %127 = vector.broadcast %cst_37 : f32 to vector<8x64xf32>
    %128 = arith.subf %126, %127 : vector<8x64xf32>
    %129 = vector.extract_strided_slice %121 {offsets = [0, 192], sizes = [8, 64], strides = [1, 1]} : vector<8x256xf32> to vector<8x64xf32>
    %130 = arith.mulf %123, %86 : vector<8x64xf32>
    %131 = arith.mulf %122, %128 : vector<8x64xf32>
    %132 = arith.addf %130, %131 : vector<8x64xf32>
    %133 = math.tanh %132 : vector<8x64xf32>
    %134 = arith.mulf %129, %133 : vector<8x64xf32>
    %135 = arith.truncf %134 : vector<8x64xf32> to vector<8x64xbf16>
    %cst_38 = arith.constant dense<0.000000e+00> : vector<8x256xf32>
    %136 = tpu.matmul %135, %2, %cst_38 {dimension_numbers = #tpu.dot_dimension_numbers<[1], [0], [0], [1], [0, 0, 1, 1], [], []>} : vector<8x64xbf16>, vector<64x256xbf16>, vector<8x256xf32> -> vector<8x256xf32>
    %cst_39 = arith.constant dense<0.000000e+00> : vector<8x256xf32>
    %137 = tpu.matmul %112, %3, %cst_39 {dimension_numbers = #tpu.dot_dimension_numbers<[1], [0], [0], [1], [0, 0, 1, 1], [], []>} : vector<8x64xbf16>, vector<64x256xbf16>, vector<8x256xf32> -> vector<8x256xf32>
    %138 = arith.addf %136, %137 : vector<8x256xf32>
    %139 = arith.addf %138, %16 : vector<8x256xf32>
    %140 = arith.negf %139 : vector<8x256xf32>
    %141 = math.exp %140 : vector<8x256xf32>
    %cst_40 = arith.constant 1.000000e+00 : f32
    %142 = vector.broadcast %cst_40 : f32 to vector<8x256xf32>
    %143 = arith.addf %142, %141 : vector<8x256xf32>
    %144 = arith.divf %142, %143 : vector<8x256xf32>
    %145 = vector.extract_strided_slice %144 {offsets = [0, 0], sizes = [8, 64], strides = [1, 1]} : vector<8x256xf32> to vector<8x64xf32>
    %146 = vector.extract_strided_slice %144 {offsets = [0, 64], sizes = [8, 64], strides = [1, 1]} : vector<8x256xf32> to vector<8x64xf32>
    %147 = vector.extract_strided_slice %144 {offsets = [0, 128], sizes = [8, 64], strides = [1, 1]} : vector<8x256xf32> to vector<8x64xf32>
    %cst_41 = arith.constant 2.000000e+00 : f32
    %148 = vector.broadcast %cst_41 : f32 to vector<8x64xf32>
    %149 = arith.mulf %148, %147 : vector<8x64xf32>
    %cst_42 = arith.constant 1.000000e+00 : f32
    %150 = vector.broadcast %cst_42 : f32 to vector<8x64xf32>
    %151 = arith.subf %149, %150 : vector<8x64xf32>
    %152 = vector.extract_strided_slice %144 {offsets = [0, 192], sizes = [8, 64], strides = [1, 1]} : vector<8x256xf32> to vector<8x64xf32>
    %153 = arith.mulf %146, %109 : vector<8x64xf32>
    %154 = arith.mulf %145, %151 : vector<8x64xf32>
    %155 = arith.addf %153, %154 : vector<8x64xf32>
    %156 = math.tanh %155 : vector<8x64xf32>
    %157 = arith.mulf %152, %156 : vector<8x64xf32>
    %158 = arith.truncf %157 : vector<8x64xf32> to vector<8x64xbf16>
    %159 = vector.extract_strided_slice %13 {offsets = [3, 0, 0], sizes = [1, 8, 256], strides = [1, 1, 1]} : vector<8x8x256xf32> to vector<1x8x256xf32>
    %160 = vector.shape_cast %159 : vector<1x8x256xf32> to vector<8x256xf32>
    %cst_43 = arith.constant dense<0.000000e+00> : vector<8x256xf32>
    %161 = tpu.matmul %135, %1, %cst_43 {dimension_numbers = #tpu.dot_dimension_numbers<[1], [0], [0], [1], [0, 0, 1, 1], [], []>} : vector<8x64xbf16>, vector<64x256xbf16>, vector<8x256xf32> -> vector<8x256xf32>
    %162 = arith.addf %160, %161 : vector<8x256xf32>
    %163 = arith.negf %162 : vector<8x256xf32>
    %164 = math.exp %163 : vector<8x256xf32>
    %cst_44 = arith.constant 1.000000e+00 : f32
    %165 = vector.broadcast %cst_44 : f32 to vector<8x256xf32>
    %166 = arith.addf %165, %164 : vector<8x256xf32>
    %167 = arith.divf %165, %166 : vector<8x256xf32>
    %168 = vector.extract_strided_slice %167 {offsets = [0, 0], sizes = [8, 64], strides = [1, 1]} : vector<8x256xf32> to vector<8x64xf32>
    %169 = vector.extract_strided_slice %167 {offsets = [0, 64], sizes = [8, 64], strides = [1, 1]} : vector<8x256xf32> to vector<8x64xf32>
    %170 = vector.extract_strided_slice %167 {offsets = [0, 128], sizes = [8, 64], strides = [1, 1]} : vector<8x256xf32> to vector<8x64xf32>
    %cst_45 = arith.constant 2.000000e+00 : f32
    %171 = vector.broadcast %cst_45 : f32 to vector<8x64xf32>
    %172 = arith.mulf %171, %170 : vector<8x64xf32>
    %cst_46 = arith.constant 1.000000e+00 : f32
    %173 = vector.broadcast %cst_46 : f32 to vector<8x64xf32>
    %174 = arith.subf %172, %173 : vector<8x64xf32>
    %175 = vector.extract_strided_slice %167 {offsets = [0, 192], sizes = [8, 64], strides = [1, 1]} : vector<8x256xf32> to vector<8x64xf32>
    %176 = arith.mulf %169, %132 : vector<8x64xf32>
    %177 = arith.mulf %168, %174 : vector<8x64xf32>
    %178 = arith.addf %176, %177 : vector<8x64xf32>
    %179 = math.tanh %178 : vector<8x64xf32>
    %180 = arith.mulf %175, %179 : vector<8x64xf32>
    %181 = arith.truncf %180 : vector<8x64xf32> to vector<8x64xbf16>
    %cst_47 = arith.constant dense<0.000000e+00> : vector<8x256xf32>
    %182 = tpu.matmul %181, %2, %cst_47 {dimension_numbers = #tpu.dot_dimension_numbers<[1], [0], [0], [1], [0, 0, 1, 1], [], []>} : vector<8x64xbf16>, vector<64x256xbf16>, vector<8x256xf32> -> vector<8x256xf32>
    %cst_48 = arith.constant dense<0.000000e+00> : vector<8x256xf32>
    %183 = tpu.matmul %158, %3, %cst_48 {dimension_numbers = #tpu.dot_dimension_numbers<[1], [0], [0], [1], [0, 0, 1, 1], [], []>} : vector<8x64xbf16>, vector<64x256xbf16>, vector<8x256xf32> -> vector<8x256xf32>
    %184 = arith.addf %182, %183 : vector<8x256xf32>
    %185 = arith.addf %184, %16 : vector<8x256xf32>
    %186 = arith.negf %185 : vector<8x256xf32>
    %187 = math.exp %186 : vector<8x256xf32>
    %cst_49 = arith.constant 1.000000e+00 : f32
    %188 = vector.broadcast %cst_49 : f32 to vector<8x256xf32>
    %189 = arith.addf %188, %187 : vector<8x256xf32>
    %190 = arith.divf %188, %189 : vector<8x256xf32>
    %191 = vector.extract_strided_slice %190 {offsets = [0, 0], sizes = [8, 64], strides = [1, 1]} : vector<8x256xf32> to vector<8x64xf32>
    %192 = vector.extract_strided_slice %190 {offsets = [0, 64], sizes = [8, 64], strides = [1, 1]} : vector<8x256xf32> to vector<8x64xf32>
    %193 = vector.extract_strided_slice %190 {offsets = [0, 128], sizes = [8, 64], strides = [1, 1]} : vector<8x256xf32> to vector<8x64xf32>
    %cst_50 = arith.constant 2.000000e+00 : f32
    %194 = vector.broadcast %cst_50 : f32 to vector<8x64xf32>
    %195 = arith.mulf %194, %193 : vector<8x64xf32>
    %cst_51 = arith.constant 1.000000e+00 : f32
    %196 = vector.broadcast %cst_51 : f32 to vector<8x64xf32>
    %197 = arith.subf %195, %196 : vector<8x64xf32>
    %198 = vector.extract_strided_slice %190 {offsets = [0, 192], sizes = [8, 64], strides = [1, 1]} : vector<8x256xf32> to vector<8x64xf32>
    %199 = arith.mulf %192, %155 : vector<8x64xf32>
    %200 = arith.mulf %191, %197 : vector<8x64xf32>
    %201 = arith.addf %199, %200 : vector<8x64xf32>
    %202 = math.tanh %201 : vector<8x64xf32>
    %203 = arith.mulf %198, %202 : vector<8x64xf32>
    %204 = arith.truncf %203 : vector<8x64xf32> to vector<8x64xbf16>
    %205 = vector.extract_strided_slice %13 {offsets = [4, 0, 0], sizes = [1, 8, 256], strides = [1, 1, 1]} : vector<8x8x256xf32> to vector<1x8x256xf32>
    %206 = vector.shape_cast %205 : vector<1x8x256xf32> to vector<8x256xf32>
    %cst_52 = arith.constant dense<0.000000e+00> : vector<8x256xf32>
    %207 = tpu.matmul %181, %1, %cst_52 {dimension_numbers = #tpu.dot_dimension_numbers<[1], [0], [0], [1], [0, 0, 1, 1], [], []>} : vector<8x64xbf16>, vector<64x256xbf16>, vector<8x256xf32> -> vector<8x256xf32>
    %208 = arith.addf %206, %207 : vector<8x256xf32>
    %209 = arith.negf %208 : vector<8x256xf32>
    %210 = math.exp %209 : vector<8x256xf32>
    %cst_53 = arith.constant 1.000000e+00 : f32
    %211 = vector.broadcast %cst_53 : f32 to vector<8x256xf32>
    %212 = arith.addf %211, %210 : vector<8x256xf32>
    %213 = arith.divf %211, %212 : vector<8x256xf32>
    %214 = vector.extract_strided_slice %213 {offsets = [0, 0], sizes = [8, 64], strides = [1, 1]} : vector<8x256xf32> to vector<8x64xf32>
    %215 = vector.extract_strided_slice %213 {offsets = [0, 64], sizes = [8, 64], strides = [1, 1]} : vector<8x256xf32> to vector<8x64xf32>
    %216 = vector.extract_strided_slice %213 {offsets = [0, 128], sizes = [8, 64], strides = [1, 1]} : vector<8x256xf32> to vector<8x64xf32>
    %cst_54 = arith.constant 2.000000e+00 : f32
    %217 = vector.broadcast %cst_54 : f32 to vector<8x64xf32>
    %218 = arith.mulf %217, %216 : vector<8x64xf32>
    %cst_55 = arith.constant 1.000000e+00 : f32
    %219 = vector.broadcast %cst_55 : f32 to vector<8x64xf32>
    %220 = arith.subf %218, %219 : vector<8x64xf32>
    %221 = vector.extract_strided_slice %213 {offsets = [0, 192], sizes = [8, 64], strides = [1, 1]} : vector<8x256xf32> to vector<8x64xf32>
    %222 = arith.mulf %215, %178 : vector<8x64xf32>
    %223 = arith.mulf %214, %220 : vector<8x64xf32>
    %224 = arith.addf %222, %223 : vector<8x64xf32>
    %225 = math.tanh %224 : vector<8x64xf32>
    %226 = arith.mulf %221, %225 : vector<8x64xf32>
    %227 = arith.truncf %226 : vector<8x64xf32> to vector<8x64xbf16>
    %cst_56 = arith.constant dense<0.000000e+00> : vector<8x256xf32>
    %228 = tpu.matmul %227, %2, %cst_56 {dimension_numbers = #tpu.dot_dimension_numbers<[1], [0], [0], [1], [0, 0, 1, 1], [], []>} : vector<8x64xbf16>, vector<64x256xbf16>, vector<8x256xf32> -> vector<8x256xf32>
    %cst_57 = arith.constant dense<0.000000e+00> : vector<8x256xf32>
    %229 = tpu.matmul %204, %3, %cst_57 {dimension_numbers = #tpu.dot_dimension_numbers<[1], [0], [0], [1], [0, 0, 1, 1], [], []>} : vector<8x64xbf16>, vector<64x256xbf16>, vector<8x256xf32> -> vector<8x256xf32>
    %230 = arith.addf %228, %229 : vector<8x256xf32>
    %231 = arith.addf %230, %16 : vector<8x256xf32>
    %232 = arith.negf %231 : vector<8x256xf32>
    %233 = math.exp %232 : vector<8x256xf32>
    %cst_58 = arith.constant 1.000000e+00 : f32
    %234 = vector.broadcast %cst_58 : f32 to vector<8x256xf32>
    %235 = arith.addf %234, %233 : vector<8x256xf32>
    %236 = arith.divf %234, %235 : vector<8x256xf32>
    %237 = vector.extract_strided_slice %236 {offsets = [0, 0], sizes = [8, 64], strides = [1, 1]} : vector<8x256xf32> to vector<8x64xf32>
    %238 = vector.extract_strided_slice %236 {offsets = [0, 64], sizes = [8, 64], strides = [1, 1]} : vector<8x256xf32> to vector<8x64xf32>
    %239 = vector.extract_strided_slice %236 {offsets = [0, 128], sizes = [8, 64], strides = [1, 1]} : vector<8x256xf32> to vector<8x64xf32>
    %cst_59 = arith.constant 2.000000e+00 : f32
    %240 = vector.broadcast %cst_59 : f32 to vector<8x64xf32>
    %241 = arith.mulf %240, %239 : vector<8x64xf32>
    %cst_60 = arith.constant 1.000000e+00 : f32
    %242 = vector.broadcast %cst_60 : f32 to vector<8x64xf32>
    %243 = arith.subf %241, %242 : vector<8x64xf32>
    %244 = vector.extract_strided_slice %236 {offsets = [0, 192], sizes = [8, 64], strides = [1, 1]} : vector<8x256xf32> to vector<8x64xf32>
    %245 = arith.mulf %238, %201 : vector<8x64xf32>
    %246 = arith.mulf %237, %243 : vector<8x64xf32>
    %247 = arith.addf %245, %246 : vector<8x64xf32>
    %248 = math.tanh %247 : vector<8x64xf32>
    %249 = arith.mulf %244, %248 : vector<8x64xf32>
    %250 = arith.truncf %249 : vector<8x64xf32> to vector<8x64xbf16>
    %251 = vector.extract_strided_slice %13 {offsets = [5, 0, 0], sizes = [1, 8, 256], strides = [1, 1, 1]} : vector<8x8x256xf32> to vector<1x8x256xf32>
    %252 = vector.shape_cast %251 : vector<1x8x256xf32> to vector<8x256xf32>
    %cst_61 = arith.constant dense<0.000000e+00> : vector<8x256xf32>
    %253 = tpu.matmul %227, %1, %cst_61 {dimension_numbers = #tpu.dot_dimension_numbers<[1], [0], [0], [1], [0, 0, 1, 1], [], []>} : vector<8x64xbf16>, vector<64x256xbf16>, vector<8x256xf32> -> vector<8x256xf32>
    %254 = arith.addf %252, %253 : vector<8x256xf32>
    %255 = arith.negf %254 : vector<8x256xf32>
    %256 = math.exp %255 : vector<8x256xf32>
    %cst_62 = arith.constant 1.000000e+00 : f32
    %257 = vector.broadcast %cst_62 : f32 to vector<8x256xf32>
    %258 = arith.addf %257, %256 : vector<8x256xf32>
    %259 = arith.divf %257, %258 : vector<8x256xf32>
    %260 = vector.extract_strided_slice %259 {offsets = [0, 0], sizes = [8, 64], strides = [1, 1]} : vector<8x256xf32> to vector<8x64xf32>
    %261 = vector.extract_strided_slice %259 {offsets = [0, 64], sizes = [8, 64], strides = [1, 1]} : vector<8x256xf32> to vector<8x64xf32>
    %262 = vector.extract_strided_slice %259 {offsets = [0, 128], sizes = [8, 64], strides = [1, 1]} : vector<8x256xf32> to vector<8x64xf32>
    %cst_63 = arith.constant 2.000000e+00 : f32
    %263 = vector.broadcast %cst_63 : f32 to vector<8x64xf32>
    %264 = arith.mulf %263, %262 : vector<8x64xf32>
    %cst_64 = arith.constant 1.000000e+00 : f32
    %265 = vector.broadcast %cst_64 : f32 to vector<8x64xf32>
    %266 = arith.subf %264, %265 : vector<8x64xf32>
    %267 = vector.extract_strided_slice %259 {offsets = [0, 192], sizes = [8, 64], strides = [1, 1]} : vector<8x256xf32> to vector<8x64xf32>
    %268 = arith.mulf %261, %224 : vector<8x64xf32>
    %269 = arith.mulf %260, %266 : vector<8x64xf32>
    %270 = arith.addf %268, %269 : vector<8x64xf32>
    %271 = math.tanh %270 : vector<8x64xf32>
    %272 = arith.mulf %267, %271 : vector<8x64xf32>
    %273 = arith.truncf %272 : vector<8x64xf32> to vector<8x64xbf16>
    %cst_65 = arith.constant dense<0.000000e+00> : vector<8x256xf32>
    %274 = tpu.matmul %273, %2, %cst_65 {dimension_numbers = #tpu.dot_dimension_numbers<[1], [0], [0], [1], [0, 0, 1, 1], [], []>} : vector<8x64xbf16>, vector<64x256xbf16>, vector<8x256xf32> -> vector<8x256xf32>
    %cst_66 = arith.constant dense<0.000000e+00> : vector<8x256xf32>
    %275 = tpu.matmul %250, %3, %cst_66 {dimension_numbers = #tpu.dot_dimension_numbers<[1], [0], [0], [1], [0, 0, 1, 1], [], []>} : vector<8x64xbf16>, vector<64x256xbf16>, vector<8x256xf32> -> vector<8x256xf32>
    %276 = arith.addf %274, %275 : vector<8x256xf32>
    %277 = arith.addf %276, %16 : vector<8x256xf32>
    %278 = arith.negf %277 : vector<8x256xf32>
    %279 = math.exp %278 : vector<8x256xf32>
    %cst_67 = arith.constant 1.000000e+00 : f32
    %280 = vector.broadcast %cst_67 : f32 to vector<8x256xf32>
    %281 = arith.addf %280, %279 : vector<8x256xf32>
    %282 = arith.divf %280, %281 : vector<8x256xf32>
    %283 = vector.extract_strided_slice %282 {offsets = [0, 0], sizes = [8, 64], strides = [1, 1]} : vector<8x256xf32> to vector<8x64xf32>
    %284 = vector.extract_strided_slice %282 {offsets = [0, 64], sizes = [8, 64], strides = [1, 1]} : vector<8x256xf32> to vector<8x64xf32>
    %285 = vector.extract_strided_slice %282 {offsets = [0, 128], sizes = [8, 64], strides = [1, 1]} : vector<8x256xf32> to vector<8x64xf32>
    %cst_68 = arith.constant 2.000000e+00 : f32
    %286 = vector.broadcast %cst_68 : f32 to vector<8x64xf32>
    %287 = arith.mulf %286, %285 : vector<8x64xf32>
    %cst_69 = arith.constant 1.000000e+00 : f32
    %288 = vector.broadcast %cst_69 : f32 to vector<8x64xf32>
    %289 = arith.subf %287, %288 : vector<8x64xf32>
    %290 = vector.extract_strided_slice %282 {offsets = [0, 192], sizes = [8, 64], strides = [1, 1]} : vector<8x256xf32> to vector<8x64xf32>
    %291 = arith.mulf %284, %247 : vector<8x64xf32>
    %292 = arith.mulf %283, %289 : vector<8x64xf32>
    %293 = arith.addf %291, %292 : vector<8x64xf32>
    %294 = math.tanh %293 : vector<8x64xf32>
    %295 = arith.mulf %290, %294 : vector<8x64xf32>
    %296 = arith.truncf %295 : vector<8x64xf32> to vector<8x64xbf16>
    %297 = vector.extract_strided_slice %13 {offsets = [6, 0, 0], sizes = [1, 8, 256], strides = [1, 1, 1]} : vector<8x8x256xf32> to vector<1x8x256xf32>
    %298 = vector.shape_cast %297 : vector<1x8x256xf32> to vector<8x256xf32>
    %cst_70 = arith.constant dense<0.000000e+00> : vector<8x256xf32>
    %299 = tpu.matmul %273, %1, %cst_70 {dimension_numbers = #tpu.dot_dimension_numbers<[1], [0], [0], [1], [0, 0, 1, 1], [], []>} : vector<8x64xbf16>, vector<64x256xbf16>, vector<8x256xf32> -> vector<8x256xf32>
    %300 = arith.addf %298, %299 : vector<8x256xf32>
    %301 = arith.negf %300 : vector<8x256xf32>
    %302 = math.exp %301 : vector<8x256xf32>
    %cst_71 = arith.constant 1.000000e+00 : f32
    %303 = vector.broadcast %cst_71 : f32 to vector<8x256xf32>
    %304 = arith.addf %303, %302 : vector<8x256xf32>
    %305 = arith.divf %303, %304 : vector<8x256xf32>
    %306 = vector.extract_strided_slice %305 {offsets = [0, 0], sizes = [8, 64], strides = [1, 1]} : vector<8x256xf32> to vector<8x64xf32>
    %307 = vector.extract_strided_slice %305 {offsets = [0, 64], sizes = [8, 64], strides = [1, 1]} : vector<8x256xf32> to vector<8x64xf32>
    %308 = vector.extract_strided_slice %305 {offsets = [0, 128], sizes = [8, 64], strides = [1, 1]} : vector<8x256xf32> to vector<8x64xf32>
    %cst_72 = arith.constant 2.000000e+00 : f32
    %309 = vector.broadcast %cst_72 : f32 to vector<8x64xf32>
    %310 = arith.mulf %309, %308 : vector<8x64xf32>
    %cst_73 = arith.constant 1.000000e+00 : f32
    %311 = vector.broadcast %cst_73 : f32 to vector<8x64xf32>
    %312 = arith.subf %310, %311 : vector<8x64xf32>
    %313 = vector.extract_strided_slice %305 {offsets = [0, 192], sizes = [8, 64], strides = [1, 1]} : vector<8x256xf32> to vector<8x64xf32>
    %314 = arith.mulf %307, %270 : vector<8x64xf32>
    %315 = arith.mulf %306, %312 : vector<8x64xf32>
    %316 = arith.addf %314, %315 : vector<8x64xf32>
    %317 = math.tanh %316 : vector<8x64xf32>
    %318 = arith.mulf %313, %317 : vector<8x64xf32>
    %319 = arith.truncf %318 : vector<8x64xf32> to vector<8x64xbf16>
    %cst_74 = arith.constant dense<0.000000e+00> : vector<8x256xf32>
    %320 = tpu.matmul %319, %2, %cst_74 {dimension_numbers = #tpu.dot_dimension_numbers<[1], [0], [0], [1], [0, 0, 1, 1], [], []>} : vector<8x64xbf16>, vector<64x256xbf16>, vector<8x256xf32> -> vector<8x256xf32>
    %cst_75 = arith.constant dense<0.000000e+00> : vector<8x256xf32>
    %321 = tpu.matmul %296, %3, %cst_75 {dimension_numbers = #tpu.dot_dimension_numbers<[1], [0], [0], [1], [0, 0, 1, 1], [], []>} : vector<8x64xbf16>, vector<64x256xbf16>, vector<8x256xf32> -> vector<8x256xf32>
    %322 = arith.addf %320, %321 : vector<8x256xf32>
    %323 = arith.addf %322, %16 : vector<8x256xf32>
    %324 = arith.negf %323 : vector<8x256xf32>
    %325 = math.exp %324 : vector<8x256xf32>
    %cst_76 = arith.constant 1.000000e+00 : f32
    %326 = vector.broadcast %cst_76 : f32 to vector<8x256xf32>
    %327 = arith.addf %326, %325 : vector<8x256xf32>
    %328 = arith.divf %326, %327 : vector<8x256xf32>
    %329 = vector.extract_strided_slice %328 {offsets = [0, 0], sizes = [8, 64], strides = [1, 1]} : vector<8x256xf32> to vector<8x64xf32>
    %330 = vector.extract_strided_slice %328 {offsets = [0, 64], sizes = [8, 64], strides = [1, 1]} : vector<8x256xf32> to vector<8x64xf32>
    %331 = vector.extract_strided_slice %328 {offsets = [0, 128], sizes = [8, 64], strides = [1, 1]} : vector<8x256xf32> to vector<8x64xf32>
    %cst_77 = arith.constant 2.000000e+00 : f32
    %332 = vector.broadcast %cst_77 : f32 to vector<8x64xf32>
    %333 = arith.mulf %332, %331 : vector<8x64xf32>
    %cst_78 = arith.constant 1.000000e+00 : f32
    %334 = vector.broadcast %cst_78 : f32 to vector<8x64xf32>
    %335 = arith.subf %333, %334 : vector<8x64xf32>
    %336 = vector.extract_strided_slice %328 {offsets = [0, 192], sizes = [8, 64], strides = [1, 1]} : vector<8x256xf32> to vector<8x64xf32>
    %337 = arith.mulf %330, %293 : vector<8x64xf32>
    %338 = arith.mulf %329, %335 : vector<8x64xf32>
    %339 = arith.addf %337, %338 : vector<8x64xf32>
    %340 = math.tanh %339 : vector<8x64xf32>
    %341 = arith.mulf %336, %340 : vector<8x64xf32>
    %342 = arith.truncf %341 : vector<8x64xf32> to vector<8x64xbf16>
    %343 = vector.extract_strided_slice %13 {offsets = [7, 0, 0], sizes = [1, 8, 256], strides = [1, 1, 1]} : vector<8x8x256xf32> to vector<1x8x256xf32>
    %344 = vector.shape_cast %343 : vector<1x8x256xf32> to vector<8x256xf32>
    %cst_79 = arith.constant dense<0.000000e+00> : vector<8x256xf32>
    %345 = tpu.matmul %319, %1, %cst_79 {dimension_numbers = #tpu.dot_dimension_numbers<[1], [0], [0], [1], [0, 0, 1, 1], [], []>} : vector<8x64xbf16>, vector<64x256xbf16>, vector<8x256xf32> -> vector<8x256xf32>
    %346 = arith.addf %344, %345 : vector<8x256xf32>
    %347 = arith.negf %346 : vector<8x256xf32>
    %348 = math.exp %347 : vector<8x256xf32>
    %cst_80 = arith.constant 1.000000e+00 : f32
    %349 = vector.broadcast %cst_80 : f32 to vector<8x256xf32>
    %350 = arith.addf %349, %348 : vector<8x256xf32>
    %351 = arith.divf %349, %350 : vector<8x256xf32>
    %352 = vector.extract_strided_slice %351 {offsets = [0, 0], sizes = [8, 64], strides = [1, 1]} : vector<8x256xf32> to vector<8x64xf32>
    %353 = vector.extract_strided_slice %351 {offsets = [0, 64], sizes = [8, 64], strides = [1, 1]} : vector<8x256xf32> to vector<8x64xf32>
    %354 = vector.extract_strided_slice %351 {offsets = [0, 128], sizes = [8, 64], strides = [1, 1]} : vector<8x256xf32> to vector<8x64xf32>
    %cst_81 = arith.constant 2.000000e+00 : f32
    %355 = vector.broadcast %cst_81 : f32 to vector<8x64xf32>
    %356 = arith.mulf %355, %354 : vector<8x64xf32>
    %cst_82 = arith.constant 1.000000e+00 : f32
    %357 = vector.broadcast %cst_82 : f32 to vector<8x64xf32>
    %358 = arith.subf %356, %357 : vector<8x64xf32>
    %359 = vector.extract_strided_slice %351 {offsets = [0, 192], sizes = [8, 64], strides = [1, 1]} : vector<8x256xf32> to vector<8x64xf32>
    %360 = arith.mulf %353, %316 : vector<8x64xf32>
    %361 = arith.mulf %352, %358 : vector<8x64xf32>
    %362 = arith.addf %360, %361 : vector<8x64xf32>
    %363 = math.tanh %362 : vector<8x64xf32>
    %364 = arith.mulf %359, %363 : vector<8x64xf32>
    %365 = arith.truncf %364 : vector<8x64xf32> to vector<8x64xbf16>
    %cst_83 = arith.constant dense<0.000000e+00> : vector<8x256xf32>
    %366 = tpu.matmul %365, %2, %cst_83 {dimension_numbers = #tpu.dot_dimension_numbers<[1], [0], [0], [1], [0, 0, 1, 1], [], []>} : vector<8x64xbf16>, vector<64x256xbf16>, vector<8x256xf32> -> vector<8x256xf32>
    %cst_84 = arith.constant dense<0.000000e+00> : vector<8x256xf32>
    %367 = tpu.matmul %342, %3, %cst_84 {dimension_numbers = #tpu.dot_dimension_numbers<[1], [0], [0], [1], [0, 0, 1, 1], [], []>} : vector<8x64xbf16>, vector<64x256xbf16>, vector<8x256xf32> -> vector<8x256xf32>
    %368 = arith.addf %366, %367 : vector<8x256xf32>
    %369 = arith.addf %368, %16 : vector<8x256xf32>
    %370 = arith.negf %369 : vector<8x256xf32>
    %371 = math.exp %370 : vector<8x256xf32>
    %cst_85 = arith.constant 1.000000e+00 : f32
    %372 = vector.broadcast %cst_85 : f32 to vector<8x256xf32>
    %373 = arith.addf %372, %371 : vector<8x256xf32>
    %374 = arith.divf %372, %373 : vector<8x256xf32>
    %375 = vector.extract_strided_slice %374 {offsets = [0, 0], sizes = [8, 64], strides = [1, 1]} : vector<8x256xf32> to vector<8x64xf32>
    %376 = vector.extract_strided_slice %374 {offsets = [0, 64], sizes = [8, 64], strides = [1, 1]} : vector<8x256xf32> to vector<8x64xf32>
    %377 = vector.extract_strided_slice %374 {offsets = [0, 128], sizes = [8, 64], strides = [1, 1]} : vector<8x256xf32> to vector<8x64xf32>
    %cst_86 = arith.constant 2.000000e+00 : f32
    %378 = vector.broadcast %cst_86 : f32 to vector<8x64xf32>
    %379 = arith.mulf %378, %377 : vector<8x64xf32>
    %cst_87 = arith.constant 1.000000e+00 : f32
    %380 = vector.broadcast %cst_87 : f32 to vector<8x64xf32>
    %381 = arith.subf %379, %380 : vector<8x64xf32>
    %382 = vector.extract_strided_slice %374 {offsets = [0, 192], sizes = [8, 64], strides = [1, 1]} : vector<8x256xf32> to vector<8x64xf32>
    %383 = arith.mulf %376, %339 : vector<8x64xf32>
    %384 = arith.mulf %375, %381 : vector<8x64xf32>
    %385 = arith.addf %383, %384 : vector<8x64xf32>
    %386 = math.tanh %385 : vector<8x64xf32>
    %387 = arith.mulf %382, %386 : vector<8x64xf32>
    %c0_88 = arith.constant 0 : index
    %c0_89 = arith.constant 0 : index
    %388 = vector.load %arg7[%c0_88, %c0_89] : memref<1x64xf32, #tpu.memory_space<vmem>>, vector<1x64xf32>
    %389 = vector.broadcast %388 : vector<1x64xf32> to vector<8x64xf32>
    %390 = arith.mulf %387, %389 : vector<8x64xf32>
    %cst_90 = arith.constant dense<0.000000e+00> : vector<8xf32>
    %391 = vector.multi_reduction <add>, %390, %cst_90 [1] : vector<8x64xf32> to vector<8xf32>
    %392 = vector.shape_cast %391 : vector<8xf32> to vector<8x1xf32>
    %c0_91 = arith.constant 0 : index
    %c0_92 = arith.constant 0 : index
    %393 = vector.load %arg8[%c0_91, %c0_92] : memref<1x1xf32, #tpu.memory_space<vmem>>, vector<1x1xf32>
    %394 = vector.broadcast %393 : vector<1x1xf32> to vector<8x1xf32>
    %395 = arith.addf %392, %394 : vector<8x1xf32>
    %c0_93 = arith.constant 0 : index
    %c0_94 = arith.constant 0 : index
    %396 = vector.load %arg9[%c0_93, %c0_94] : memref<8x1xf32, #tpu.memory_space<vmem>>, vector<8x1xf32>
    tpu.vector_store %arg9[%c0_93, %c0_94], %395 {strides = array<i32>} : memref<8x1xf32, #tpu.memory_space<vmem>>, vector<8x1xf32>,
    return
  }
}

</mosaic_0001>

<llo_original>
// kernel: tpu_custom_call.1
$region0: #{tpu_custom_call.1}
  #allocation0 [shape = 'u32[]', space=smem, size = 0x4, offset = 0x4, fixed_abs, tag = 'smem constant byte address 0x4 - core index']
  #allocation1 [shape = 'u32[144,128]{1,0:T(1,128)}', space=vmem, size = 0x12000, scoped, tag = 'internal scratch']
  #allocation2 [shape = 'f32[1,1]{1,0:T(1,128)S(1)}', space=vmem, size = 0x200, scoped, tag = 'scoped memory for tpu_custom_call.1']
  %s0 = inlined_call_operand.hbm [shape: f32[8,8], index: 0, kind: input, shape index: {}]
  %s1 = inlined_call_operand.vmem [shape: f32[1,256], index: 1, kind: input, shape index: {}]
  %s2 = inlined_call_operand.hbm [shape: bf16[64,256], index: 2, kind: input, shape index: {}]
  %s3 = inlined_call_operand.vmem [shape: f32[1,256], index: 3, kind: input, shape index: {}]
  %s4 = inlined_call_operand.hbm [shape: bf16[64,256], index: 4, kind: input, shape index: {}]
  %s5 = inlined_call_operand.hbm [shape: bf16[64,256], index: 5, kind: input, shape index: {}]
  %s6 = inlined_call_operand.vmem [shape: f32[1,256], index: 6, kind: input, shape index: {}]
  %s7 = inlined_call_operand.vmem [shape: f32[1,64], index: 7, kind: input, shape index: {}]
  %s8 = inlined_call_operand.<no memory space> [shape: f32[1,1], index: 8, kind: input, shape index: {}]
  %s9 = inlined_call_operand.vmem [shape: f32[8,1], index: 9, kind: output, shape index: {}]
  %s10 = sld [smem:[#allocation0]]
  $region62: #{tpu_custom_call.1} parent=0
    _
  %s12 = ssub.s32 1, %s10
  %s13 = scalar_select 0, %s12, %s10
  %v14 = vstv %s8
  %15 = vst [vmem:[#allocation2] sm:$0x1] %v14
  $region1: #{tpu_custom_call.1} parent=0
    #allocation3 [shape = 'u8[4096]{0}', space=vmem, size = 0x1000, scoped, tag = 'input window, operand 0, single buffered']
    #allocation4 [shape = 's32[1]{0}', space=sflag, size = 0x4, scoped, tag = 'scoped memory for tpu_custom_call.1']
    #allocation5 [shape = 'u8[32768]{0}', space=vmem, size = 0x8000, scoped, tag = 'input window, operand 2, single buffered']
    #allocation6 [shape = 's32[1]{0}', space=sflag, size = 0x4, scoped, tag = 'scoped memory for tpu_custom_call.1']
    #allocation7 [shape = 'u8[32768]{0}', space=vmem, size = 0x8000, scoped, tag = 'input window, operand 4, single buffered']
    #allocation8 [shape = 'u8[32768]{0}', space=vmem, size = 0x8000, scoped, tag = 'input window, operand 5, single buffered']
    #allocation9 [shape = 's32[1]{0}', space=sflag, size = 0x4, scoped, tag = 'scoped memory for tpu_custom_call.1']
    %16 = vsyncpa [#allocation4], 0
    %17 = vsyncpa [#allocation6], 0
    %18 = vsyncpa [#allocation9], 0
    // Predicated region
    $region2: #{tpu_custom_call.1} parent=1 // pred_check
      _
    $region3: #{tpu_custom_call.1} parent=1 // pred_check_branch
      %20 = sbr.rel (0) target = $region5
    $region4: #{tpu_custom_call.1} parent=1 // pred_region
      %s22 = ssub.s32 128, 128
      %23 = vsyncadd [#allocation4], %s22
      %s25 = sshll.u32 [#allocation3], 4
      %s26 = int_to_ptr.vmem [resolvable:$true] %s25
      %28 = dma.hbm_to_vmem [thread:$0]  %s0, 128, %s26, [#allocation4]
    $region5: #{tpu_custom_call.1} parent=1 // pred_fallthru
      _
    // Predicated region
    $region6: #{tpu_custom_call.1} parent=1 // pred_check
      _
    $region7: #{tpu_custom_call.1} parent=1 // pred_check_branch
      %30 = sbr.rel (0) target = $region9
    $region8: #{tpu_custom_call.1} parent=1 // pred_region
      _
    $region9: #{tpu_custom_call.1} parent=1 // pred_fallthru
      _
    // Predicated region
    $region10: #{tpu_custom_call.1} parent=1 // pred_check
      _
    $region11: #{tpu_custom_call.1} parent=1 // pred_check_branch
      %32 = sbr.rel (0) target = $region13
    $region12: #{tpu_custom_call.1} parent=1 // pred_region
      %s34 = ssub.s32 1024, 1024
      %35 = vsyncadd [#allocation6], %s34
      %s36 = sshll.u32 [#allocation5], 4
      %s37 = int_to_ptr.vmem [resolvable:$true] %s36
      %42 = dma.hbm_to_vmem [thread:$0]  %s2, 1024, %s37, [#allocation6], 128, 128, 8
    $region13: #{tpu_custom_call.1} parent=1 // pred_fallthru
      _
    // Predicated region
    $region14: #{tpu_custom_call.1} parent=1 // pred_check
      _
    $region15: #{tpu_custom_call.1} parent=1 // pred_check_branch
      %44 = sbr.rel (0) target = $region17
    $region16: #{tpu_custom_call.1} parent=1 // pred_region
      _
    $region17: #{tpu_custom_call.1} parent=1 // pred_fallthru
      _
    // Predicated region
    $region18: #{tpu_custom_call.1} parent=1 // pred_check
      _
    $region19: #{tpu_custom_call.1} parent=1 // pred_check_branch
      %46 = sbr.rel (0) target = $region21
    $region20: #{tpu_custom_call.1} parent=1 // pred_region
      %s48 = ssub.s32 1024, 1024
      %49 = vsyncadd [#allocation6], %s48
      %s50 = sshll.u32 [#allocation7], 4
      %s51 = int_to_ptr.vmem [resolvable:$true] %s50
      %56 = dma.hbm_to_vmem [thread:$0]  %s4, 1024, %s51, [#allocation6], 128, 128, 8
    $region21: #{tpu_custom_call.1} parent=1 // pred_fallthru
      _
    // Predicated region
    $region22: #{tpu_custom_call.1} parent=1 // pred_check
      _
    $region23: #{tpu_custom_call.1} parent=1 // pred_check_branch
      %58 = sbr.rel (0) target = $region25
    $region24: #{tpu_custom_call.1} parent=1 // pred_region
      %s60 = ssub.s32 1024, 1024
      %61 = vsyncadd [#allocation9], %s60
      %s62 = sshll.u32 [#allocation8], 4
      %s63 = int_to_ptr.vmem [resolvable:$true] %s62
      %68 = dma.hbm_to_vmem [thread:$0]  %s5, 1024, %s63, [#allocation9], 128, 128, 8
    $region25: #{tpu_custom_call.1} parent=1 // pred_fallthru
      _
    // Predicated region
    $region26: #{tpu_custom_call.1} parent=1 // pred_check
      _
    $region27: #{tpu_custom_call.1} parent=1 // pred_check_branch
      %70 = sbr.rel (0) target = $region29
    $region28: #{tpu_custom_call.1} parent=1 // pred_region
      _
    $region29: #{tpu_custom_call.1} parent=1 // pred_fallthru
      _
    // Predicated region
    $region30: #{tpu_custom_call.1} parent=1 // pred_check
      _
    $region31: #{tpu_custom_call.1} parent=1 // pred_check_branch
      %72 = sbr.rel (0) target = $region33
    $region32: #{tpu_custom_call.1} parent=1 // pred_region
      _
    $region33: #{tpu_custom_call.1} parent=1 // pred_fallthru
      _
    // Predicated region
    $region34: #{tpu_custom_call.1} parent=1 // pred_check
      _
    $region35: #{tpu_custom_call.1} parent=1 // pred_check_branch
      %74 = sbr.rel (0) target = $region37
    $region36: #{tpu_custom_call.1} parent=1 // pred_region
      _
    $region37: #{tpu_custom_call.1} parent=1 // pred_fallthru
      _
    // Predicated region
    $region38: #{tpu_custom_call.1} parent=1 // pred_check
      _
    $region39: #{tpu_custom_call.1} parent=1 // pred_check_branch
      %76 = sbr.rel (0) target = $region41
    $region40: #{tpu_custom_call.1} parent=1 // pred_region
      %77 = dma.done [#allocation4], 128
    $region41: #{tpu_custom_call.1} parent=1 // pred_fallthru
      _
    // Predicated region
    $region42: #{tpu_custom_call.1} parent=1 // pred_check
      _
    $region43: #{tpu_custom_call.1} parent=1 // pred_check_branch
      %79 = sbr.rel (0) target = $region45
    $region44: #{tpu_custom_call.1} parent=1 // pred_region
      %80 = dma.done [#allocation6], 1024
    $region45: #{tpu_custom_call.1} parent=1 // pred_fallthru
      _
    // Predicated region
    $region46: #{tpu_custom_call.1} parent=1 // pred_check
      _
    $region47: #{tpu_custom_call.1} parent=1 // pred_check_branch
      %82 = sbr.rel (0) target = $region49
    $region48: #{tpu_custom_call.1} parent=1 // pred_region
      %83 = dma.done [#allocation6], 1024
    $region49: #{tpu_custom_call.1} parent=1 // pred_fallthru
      _
    // Predicated region
    $region50: #{tpu_custom_call.1} parent=1 // pred_check
      _
    $region51: #{tpu_custom_call.1} parent=1 // pred_check_branch
      %85 = sbr.rel (0) target = $region53
    $region52: #{tpu_custom_call.1} parent=1 // pred_region
      %86 = dma.done [#allocation9], 1024
    $region53: #{tpu_custom_call.1} parent=1 // pred_fallthru
      _
    %v88 = vld [vmem:[#allocation3] sm:$0xff]
    %v89 = vld [vmem:[#allocation5] sm:$0xff]
    %v90 = vld [vmem:[#allocation5 + $0x8] sm:$0xff]
    %v91 = vld [vmem:[#allocation5 + $0x10] sm:$0xff]
    %v92 = vld [vmem:[#allocation5 + $0x18] sm:$0xff]
    %v93 = vld [vmem:[#allocation5 + $0x20] sm:$0xff]
    %v94 = vld [vmem:[#allocation5 + $0x28] sm:$0xff]
    %v95 = vld [vmem:[#allocation5 + $0x30] sm:$0xff]
    %v96 = vld [vmem:[#allocation5 + $0x38] sm:$0xff]
    %v97 = vld [vmem:[#allocation7] sm:$0xff]
    %v98 = vld [vmem:[#allocation7 + $0x8] sm:$0xff]
    %v99 = vld [vmem:[#allocation7 + $0x10] sm:$0xff]
    %v100 = vld [vmem:[#allocation7 + $0x18] sm:$0xff]
    %v101 = vld [vmem:[#allocation7 + $0x20] sm:$0xff]
    %v102 = vld [vmem:[#allocation7 + $0x28] sm:$0xff]
    %v103 = vld [vmem:[#allocation7 + $0x30] sm:$0xff]
    %v104 = vld [vmem:[#allocation7 + $0x38] sm:$0xff]
    %v105 = vld [vmem:[#allocation8] sm:$0xff]
    %v106 = vld [vmem:[#allocation8 + $0x8] sm:$0xff]
    %v107 = vld [vmem:[#allocation8 + $0x10] sm:$0xff]
    %v108 = vld [vmem:[#allocation8 + $0x18] sm:$0xff]
    %v109 = vld [vmem:[#allocation8 + $0x20] sm:$0xff]
    %v110 = vld [vmem:[#allocation8 + $0x28] sm:$0xff]
    %v111 = vld [vmem:[#allocation8 + $0x30] sm:$0xff]
    %v112 = vld [vmem:[#allocation8 + $0x38] sm:$0xff]
    %v113 = vlaneseq
    %v114 = vshrl.u32 %v113, 7
    %v115 = vsub.s32 0, %v114
    %v116 = vrot.slane %v88, %v115
    %118 = vbcast.lane.b32.xlu0 %v116, 256
    %v119 = vpop.permute.xlu0 %118
    %v120 = vlaneseq
    %v121 = vshrl.u32 %v120, 7
    %v122 = vsub.s32 1, %v121
    %v123 = vrot.slane %v88, %v122
    %125 = vbcast.lane.b32.xlu0 %v123, 256
    %v126 = vpop.permute.xlu0 %125
    %v127 = vlaneseq
    %v128 = vshrl.u32 %v127, 7
    %v129 = vsub.s32 2, %v128
    %v130 = vrot.slane %v88, %v129
    %132 = vbcast.lane.b32.xlu0 %v130, 256
    %v133 = vpop.permute.xlu0 %132
    %v134 = vlaneseq
    %v135 = vshrl.u32 %v134, 7
    %v136 = vsub.s32 3, %v135
    %v137 = vrot.slane %v88, %v136
    %139 = vbcast.lane.b32.xlu0 %v137, 256
    %v140 = vpop.permute.xlu0 %139
    %v141 = vlaneseq
    %v142 = vshrl.u32 %v141, 7
    %v143 = vsub.s32 4, %v142
    %v144 = vrot.slane %v88, %v143
    %146 = vbcast.lane.b32.xlu0 %v144, 256
    %v147 = vpop.permute.xlu0 %146
    %v148 = vlaneseq
    %v149 = vshrl.u32 %v148, 7
    %v150 = vsub.s32 5, %v149
    %v151 = vrot.slane %v88, %v150
    %153 = vbcast.lane.b32.xlu0 %v151, 256
    %v154 = vpop.permute.xlu0 %153
    %v155 = vlaneseq
    %v156 = vshrl.u32 %v155, 7
    %v157 = vsub.s32 6, %v156
    %v158 = vrot.slane %v88, %v157
    %160 = vbcast.lane.b32.xlu0 %v158, 256
    %v161 = vpop.permute.xlu0 %160
    %v162 = vlaneseq
    %v163 = vshrl.u32 %v162, 7
    %v164 = vsub.s32 7, %v163
    %v165 = vrot.slane %v88, %v164
    %167 = vbcast.lane.b32.xlu0 %v165, 256
    %v168 = vpop.permute.xlu0 %167
    %v169 = vld [vmem:[%s1] sm:$0x3]
    %v171 = vlaneseq
    %v172 = vshrl.u32 %v171, 7
    %v173 = vsub.s32 0, %v172
    %v174 = vrot.slane %v169, %v173
    %v175 = vlaneseq
    %v176 = vshrl.u32 %v175, 7
    %v177 = vsub.s32 1, %v176
    %v178 = vrot.slane %v169, %v177
    %v181 = vmul.f32 %v119, %v174
    %v182 = vmul.f32 %v119, %v178
    %v183 = vmul.f32 %v126, %v174
    %v184 = vmul.f32 %v126, %v178
    %v185 = vmul.f32 %v133, %v174
    %v186 = vmul.f32 %v133, %v178
    %v187 = vmul.f32 %v140, %v174
    %v188 = vmul.f32 %v140, %v178
    %v189 = vmul.f32 %v147, %v174
    %v190 = vmul.f32 %v147, %v178
    %v191 = vmul.f32 %v154, %v174
    %v192 = vmul.f32 %v154, %v178
    %v193 = vmul.f32 %v161, %v174
    %v194 = vmul.f32 %v161, %v178
    %v195 = vmul.f32 %v168, %v174
    %v196 = vmul.f32 %v168, %v178
    %v197 = vld [vmem:[%s3] sm:$0x3]
    %v199 = vlaneseq
    %v200 = vshrl.u32 %v199, 7
    %v201 = vsub.s32 0, %v200
    %v202 = vrot.slane %v197, %v201
    %v203 = vlaneseq
    %v204 = vshrl.u32 %v203, 7
    %v205 = vsub.s32 1, %v204
    %v206 = vrot.slane %v197, %v205
    %v209 = vadd.f32 %v181, %v202
    %v210 = vadd.f32 %v182, %v206
    %v211 = vadd.f32 %v183, %v202
    %v212 = vadd.f32 %v184, %v206
    %v213 = vadd.f32 %v185, %v202
    %v214 = vadd.f32 %v186, %v206
    %v215 = vadd.f32 %v187, %v202
    %v216 = vadd.f32 %v188, %v206
    %v217 = vadd.f32 %v189, %v202
    %v218 = vadd.f32 %v190, %v206
    %v219 = vadd.f32 %v191, %v202
    %v220 = vadd.f32 %v192, %v206
    %v221 = vadd.f32 %v193, %v202
    %v222 = vadd.f32 %v194, %v206
    %v223 = vadd.f32 %v195, %v202
    %v224 = vadd.f32 %v196, %v206
    %v225 = vld [vmem:[%s6] sm:$0x3]
    %v227 = vlaneseq
    %v228 = vshrl.u32 %v227, 7
    %v229 = vsub.s32 0, %v228
    %v230 = vrot.slane %v225, %v229
    %v231 = vlaneseq
    %v232 = vshrl.u32 %v231, 7
    %v233 = vsub.s32 1, %v232
    %v234 = vrot.slane %v225, %v233
    %v245 = vunpack.c.l.b16 %v89
    %v246 = vunpack.c.h.b16 %v89
    %v247 = vunpack.c.l.b16 %v90
    %v248 = vunpack.c.h.b16 %v90
    %v249 = vunpack.c.l.b16 %v91
    %v250 = vunpack.c.h.b16 %v91
    %v251 = vunpack.c.l.b16 %v92
    %v252 = vunpack.c.h.b16 %v92
    %v253 = vunpack.c.l.b16 %v93
    %v254 = vunpack.c.h.b16 %v93
    %v255 = vunpack.c.l.b16 %v94
    %v256 = vunpack.c.h.b16 %v94
    %v257 = vunpack.c.l.b16 %v95
    %v258 = vunpack.c.h.b16 %v95
    %v259 = vunpack.c.l.b16 %v96
    %v260 = vunpack.c.h.b16 %v96
    %v261 = vpack.c.b16 %v247, %v245
    %v262 = vpack.c.b16 %v248, %v246
    %v263 = vpack.c.b16 %v251, %v249
    %v264 = vpack.c.b16 %v252, %v250
    %v265 = vpack.c.b16 %v255, %v253
    %v266 = vpack.c.b16 %v256, %v254
    %v267 = vpack.c.b16 %v259, %v257
    %v268 = vpack.c.b16 %v260, %v258
    %vm277 = vcmask 523264
    %v279 = vsel %vm277, 0, 0
    %281 = vmatprep.subr.bf16.mxu0 %v262
    %282 = vmatpush1.bf16.msra.mxu0 %v261
    %283 = vmatprep.subr.bf16.mxu0 %v264
    %284 = vmatpush1.bf16.msra.mxu0 %v263
    %285 = vmatprep.subr.bf16.mxu0 %v266
    %286 = vmatpush1.bf16.msra.mxu0 %v265
    %287 = vmatprep.subr.bf16.mxu0 %v268
    %288 = vmatpush1.bf16.msra.mxu0 %v267
    %289 = vmatprep.subr.bf16.mxu0 0
    %290 = vmatpush1.bf16.msra.mxu0 0
    %291 = vmatprep.subr.bf16.mxu0 0
    %292 = vmatpush1.bf16.msra.mxu0 0
    %293 = vmatprep.subr.bf16.mxu0 0
    %294 = vmatpush1.bf16.msra.mxu0 0
    %295 = vmatprep.subr.bf16.mxu0 0
    %296 = vmatpush1.bf16.msra.mxu0 0
    %297 = vmatprep.subr.bf16.mxu0 0
    %298 = vmatpush1.bf16.msra.mxu0 0
    %299 = vmatprep.subr.bf16.mxu0 0
    %300 = vmatpush1.bf16.msra.mxu0 0
    %301 = vmatprep.subr.bf16.mxu0 0
    %302 = vmatpush1.bf16.msra.mxu0 0
    %303 = vmatprep.subr.bf16.mxu0 0
    %304 = vmatpush1.bf16.msra.mxu0 0
    %305 = vmatprep.subr.bf16.mxu0 0
    %306 = vmatpush1.bf16.msra.mxu0 0
    %307 = vmatprep.subr.bf16.mxu0 0
    %308 = vmatpush1.bf16.msra.mxu0 0
    %309 = vmatprep.subr.bf16.mxu0 0
    %310 = vmatpush1.bf16.msra.mxu0 0
    %311 = vmatprep.subr.bf16.mxu0 0
    %312 = vmatpush1.bf16.msra.mxu0 0
    %313 = vmatprep.mubr.bf16.mxu0 0
    %314 = vmatmul.mubr.bf16.gmra.mrb[0].mxu0 %v279
    %v315 = vpop.f32.mrb[0].mxu0
    %v316 = vadd.f32 0.0, %v315
    %v317 = vpop.f32.mrb[0].mxu0
    %v318 = vadd.f32 0.0, %v317
    %v319 = vpop.f32.mrb[0].mxu0
    %v320 = vpop.f32.mrb[0].mxu0
    %321 = vdwg.mxu0
    %v322 = vadd.f32 %v209, %v316
    %v323 = vadd.f32 %v210, %v318
    %v324 = vxor.u32 %v322, 2147483648
    %v325 = vxor.u32 %v323, 2147483648
    %v326 = vmul.f32 %v324, 1.442695
    %v327 = vpow.pop %v326
    %v328 = vmul.f32 %v325, 1.442695
    %v329 = vpow.pop %v328
    %v330 = vadd.f32 %v327, 1.0
    %v331 = vadd.f32 %v329, 1.0
    %v332 = vrcp.pop %v330
    %v333 = vmul.f32 1.0, %v332
    %v334 = vrcp.pop %v331
    %v335 = vmul.f32 1.0, %v334
    %v336 = vmul.f32 %v335, 2.0
    %v337 = vsub.f32 %v336, 1.0
    %v338 = vmul.f32 %v333, 0.0
    %v339 = vmul.f32 %v333, %v337
    %341 = vrot.lane.b32.xlu0 %v339, 64
    %v342 = vpop.permute.xlu0 %341
    %v344 = vadd.f32 %v338, %v342
    %v345 = vtanh.pop %v344
    %v346 = vmul.f32 %v335, %v345
    %v347 = vpack.c.bf16 %v346, %v346
    %v356 = vunpack.c.l.b16 %v105
    %v357 = vunpack.c.h.b16 %v105
    %v358 = vunpack.c.l.b16 %v106
    %v359 = vunpack.c.h.b16 %v106
    %v360 = vunpack.c.l.b16 %v107
    %v361 = vunpack.c.h.b16 %v107
    %v362 = vunpack.c.l.b16 %v108
    %v363 = vunpack.c.h.b16 %v108
    %v364 = vunpack.c.l.b16 %v109
    %v365 = vunpack.c.h.b16 %v109
    %v366 = vunpack.c.l.b16 %v110
    %v367 = vunpack.c.h.b16 %v110
    %v368 = vunpack.c.l.b16 %v111
    %v369 = vunpack.c.h.b16 %v111
    %v370 = vunpack.c.l.b16 %v112
    %v371 = vunpack.c.h.b16 %v112
    %v372 = vpack.c.b16 %v358, %v356
    %v373 = vpack.c.b16 %v359, %v357
    %v374 = vpack.c.b16 %v362, %v360
    %v375 = vpack.c.b16 %v363, %v361
    %v376 = vpack.c.b16 %v366, %v364
    %v377 = vpack.c.b16 %v367, %v365
    %v378 = vpack.c.b16 %v370, %v368
    %v379 = vpack.c.b16 %v371, %v369
    %388 = vmatprep.subr.bf16.mxu0 %v373
    %389 = vmatpush1.bf16.msra.mxu0 %v372
    %390 = vmatprep.subr.bf16.mxu0 %v375
    %391 = vmatpush1.bf16.msra.mxu0 %v374
    %392 = vmatprep.subr.bf16.mxu0 %v377
    %393 = vmatpush1.bf16.msra.mxu0 %v376
    %394 = vmatprep.subr.bf16.mxu0 %v379
    %395 = vmatpush1.bf16.msra.mxu0 %v378
    %396 = vmatprep.subr.bf16.mxu0 0
    %397 = vmatpush1.bf16.msra.mxu0 0
    %398 = vmatprep.subr.bf16.mxu0 0
    %399 = vmatpush1.bf16.msra.mxu0 0
    %400 = vmatprep.subr.bf16.mxu0 0
    %401 = vmatpush1.bf16.msra.mxu0 0
    %402 = vmatprep.subr.bf16.mxu0 0
    %403 = vmatpush1.bf16.msra.mxu0 0
    %404 = vmatprep.subr.bf16.mxu0 0
    %405 = vmatpush1.bf16.msra.mxu0 0
    %406 = vmatprep.subr.bf16.mxu0 0
    %407 = vmatpush1.bf16.msra.mxu0 0
    %408 = vmatprep.subr.bf16.mxu0 0
    %409 = vmatpush1.bf16.msra.mxu0 0
    %410 = vmatprep.subr.bf16.mxu0 0
    %411 = vmatpush1.bf16.msra.mxu0 0
    %412 = vmatprep.subr.bf16.mxu0 0
    %413 = vmatpush1.bf16.msra.mxu0 0
    %414 = vmatprep.subr.bf16.mxu0 0
    %415 = vmatpush1.bf16.msra.mxu0 0
    %416 = vmatprep.subr.bf16.mxu0 0
    %417 = vmatpush1.bf16.msra.mxu0 0
    %418 = vmatprep.subr.bf16.mxu0 0
    %419 = vmatpush1.bf16.msra.mxu0 0
    %420 = vmatprep.mubr.bf16.mxu0 0
    %421 = vmatmul.mubr.bf16.gmra.mrb[0].mxu0 %v279
    %v422 = vpop.f32.mrb[0].mxu0
    %v423 = vadd.f32 0.0, %v422
    %v424 = vpop.f32.mrb[0].mxu0
    %v425 = vadd.f32 0.0, %v424
    %v426 = vpop.f32.mrb[0].mxu0
    %v427 = vpop.f32.mrb[0].mxu0
    %428 = vdwg.mxu0
    %430 = vrot.lane.b32.xlu0 %v347, 64
    %v431 = vpop.permute.xlu0 %430
    %v440 = vunpack.c.l.b16 %v97
    %v441 = vunpack.c.h.b16 %v97
    %v442 = vunpack.c.l.b16 %v98
    %v443 = vunpack.c.h.b16 %v98
    %v444 = vunpack.c.l.b16 %v99
    %v445 = vunpack.c.h.b16 %v99
    %v446 = vunpack.c.l.b16 %v100
    %v447 = vunpack.c.h.b16 %v100
    %v448 = vunpack.c.l.b16 %v101
    %v449 = vunpack.c.h.b16 %v101
    %v450 = vunpack.c.l.b16 %v102
    %v451 = vunpack.c.h.b16 %v102
    %v452 = vunpack.c.l.b16 %v103
    %v453 = vunpack.c.h.b16 %v103
    %v454 = vunpack.c.l.b16 %v104
    %v455 = vunpack.c.h.b16 %v104
    %v456 = vpack.c.b16 %v442, %v440
    %v457 = vpack.c.b16 %v443, %v441
    %v458 = vpack.c.b16 %v446, %v444
    %v459 = vpack.c.b16 %v447, %v445
    %v460 = vpack.c.b16 %v450, %v448
    %v461 = vpack.c.b16 %v451, %v449
    %v462 = vpack.c.b16 %v454, %v452
    %v463 = vpack.c.b16 %v455, %v453
    %v473 = vsel %vm277, %v431, 0
    %475 = vmatprep.subr.bf16.mxu0 %v457
    %476 = vmatpush1.bf16.msra.mxu0 %v456
    %477 = vmatprep.subr.bf16.mxu0 %v459
    %478 = vmatpush1.bf16.msra.mxu0 %v458
    %479 = vmatprep.subr.bf16.mxu0 %v461
    %480 = vmatpush1.bf16.msra.mxu0 %v460
    %481 = vmatprep.subr.bf16.mxu0 %v463
    %482 = vmatpush1.bf16.msra.mxu0 %v462
    %483 = vmatprep.subr.bf16.mxu0 0
    %484 = vmatpush1.bf16.msra.mxu0 0
    %485 = vmatprep.subr.bf16.mxu0 0
    %486 = vmatpush1.bf16.msra.mxu0 0
    %487 = vmatprep.subr.bf16.mxu0 0
    %488 = vmatpush1.bf16.msra.mxu0 0
    %489 = vmatprep.subr.bf16.mxu0 0
    %490 = vmatpush1.bf16.msra.mxu0 0
    %491 = vmatprep.subr.bf16.mxu0 0
    %492 = vmatpush1.bf16.msra.mxu0 0
    %493 = vmatprep.subr.bf16.mxu0 0
    %494 = vmatpush1.bf16.msra.mxu0 0
    %495 = vmatprep.subr.bf16.mxu0 0
    %496 = vmatpush1.bf16.msra.mxu0 0
    %497 = vmatprep.subr.bf16.mxu0 0
    %498 = vmatpush1.bf16.msra.mxu0 0
    %499 = vmatprep.subr.bf16.mxu0 0
    %500 = vmatpush1.bf16.msra.mxu0 0
    %501 = vmatprep.subr.bf16.mxu0 0
    %502 = vmatpush1.bf16.msra.mxu0 0
    %503 = vmatprep.subr.bf16.mxu0 0
    %504 = vmatpush1.bf16.msra.mxu0 0
    %505 = vmatprep.subr.bf16.mxu0 0
    %506 = vmatpush1.bf16.msra.mxu0 0
    %507 = vmatprep.mubr.bf16.mxu0 0
    %508 = vmatmul.mubr.bf16.gmra.mrb[0].mxu0 %v473
    %v509 = vpop.f32.mrb[0].mxu0
    %v510 = vadd.f32 %v423, %v509
    %v511 = vpop.f32.mrb[0].mxu0
    %v512 = vadd.f32 %v425, %v511
    %v513 = vpop.f32.mrb[0].mxu0
    %v514 = vpop.f32.mrb[0].mxu0
    %515 = vdwg.mxu0
    %v516 = vadd.f32 %v510, %v230
    %v517 = vadd.f32 %v512, %v234
    %v518 = vxor.u32 %v516, 2147483648
    %v519 = vxor.u32 %v517, 2147483648
    %v520 = vmul.f32 %v518, 1.442695
    %v521 = vpow.pop %v520
    %v522 = vmul.f32 %v519, 1.442695
    %v523 = vpow.pop %v522
    %v524 = vadd.f32 %v521, 1.0
    %v525 = vadd.f32 %v523, 1.0
    %v526 = vrcp.pop %v524
    %v527 = vmul.f32 1.0, %v526
    %v528 = vrcp.pop %v525
    %v529 = vmul.f32 1.0, %v528
    %v530 = vmul.f32 %v529, 2.0
    %v531 = vsub.f32 %v530, 1.0
    %v532 = vmul.f32 %v527, 0.0
    %v533 = vmul.f32 %v527, %v531
    %535 = vrot.lane.b32.xlu0 %v533, 64
    %v536 = vpop.permute.xlu0 %535
    %v538 = vadd.f32 %v532, %v536
    %v539 = vtanh.pop %v538
    %v540 = vmul.f32 %v529, %v539
    %v541 = vpack.c.bf16 %v540, %v540
    %542 = vmatprep.subr.bf16.mxu0 %v262
    %543 = vmatpush1.bf16.msra.mxu0 %v261
    %544 = vmatprep.subr.bf16.mxu0 %v264
    %545 = vmatpush1.bf16.msra.mxu0 %v263
    %546 = vmatprep.subr.bf16.mxu0 %v266
    %547 = vmatpush1.bf16.msra.mxu0 %v265
    %548 = vmatprep.subr.bf16.mxu0 %v268
    %549 = vmatpush1.bf16.msra.mxu0 %v267
    %550 = vmatprep.subr.bf16.mxu0 0
    %551 = vmatpush1.bf16.msra.mxu0 0
    %552 = vmatprep.subr.bf16.mxu0 0
    %553 = vmatpush1.bf16.msra.mxu0 0
    %554 = vmatprep.subr.bf16.mxu0 0
    %555 = vmatpush1.bf16.msra.mxu0 0
    %556 = vmatprep.subr.bf16.mxu0 0
    %557 = vmatpush1.bf16.msra.mxu0 0
    %558 = vmatprep.subr.bf16.mxu0 0
    %559 = vmatpush1.bf16.msra.mxu0 0
    %560 = vmatprep.subr.bf16.mxu0 0
    %561 = vmatpush1.bf16.msra.mxu0 0
    %562 = vmatprep.subr.bf16.mxu0 0
    %563 = vmatpush1.bf16.msra.mxu0 0
    %564 = vmatprep.subr.bf16.mxu0 0
    %565 = vmatpush1.bf16.msra.mxu0 0
    %566 = vmatprep.subr.bf16.mxu0 0
    %567 = vmatpush1.bf16.msra.mxu0 0
    %568 = vmatprep.subr.bf16.mxu0 0
    %569 = vmatpush1.bf16.msra.mxu0 0
    %570 = vmatprep.subr.bf16.mxu0 0
    %571 = vmatpush1.bf16.msra.mxu0 0
    %572 = vmatprep.subr.bf16.mxu0 0
    %573 = vmatpush1.bf16.msra.mxu0 0
    %574 = vmatprep.mubr.bf16.mxu0 0
    %575 = vmatmul.mubr.bf16.gmra.mrb[0].mxu0 %v473
    %v576 = vpop.f32.mrb[0].mxu0
    %v577 = vadd.f32 0.0, %v576
    %v578 = vpop.f32.mrb[0].mxu0
    %v579 = vadd.f32 0.0, %v578
    %v580 = vpop.f32.mrb[0].mxu0
    %v581 = vpop.f32.mrb[0].mxu0
    %582 = vdwg.mxu0
    %v583 = vadd.f32 %v211, %v577
    %v584 = vadd.f32 %v212, %v579
    %v585 = vxor.u32 %v583, 2147483648
    %v586 = vxor.u32 %v584, 2147483648
    %v587 = vmul.f32 %v585, 1.442695
    %v588 = vpow.pop %v587
    %v589 = vmul.f32 %v586, 1.442695
    %v590 = vpow.pop %v589
    %v591 = vadd.f32 %v588, 1.0
    %v592 = vadd.f32 %v590, 1.0
    %v593 = vrcp.pop %v591
    %v594 = vmul.f32 1.0, %v593
    %v595 = vrcp.pop %v592
    %v596 = vmul.f32 1.0, %v595
    %v597 = vmul.f32 %v596, 2.0
    %v598 = vsub.f32 %v597, 1.0
    %v599 = vmul.f32 %v594, %v344
    %v600 = vmul.f32 %v594, %v598
    %602 = vrot.lane.b32.xlu0 %v600, 64
    %v603 = vpop.permute.xlu0 %602
    %v605 = vadd.f32 %v599, %v603
    %v606 = vtanh.pop %v605
    %v607 = vmul.f32 %v596, %v606
    %v608 = vpack.c.bf16 %v607, %v607
    %610 = vrot.lane.b32.xlu0 %v541, 64
    %v611 = vpop.permute.xlu0 %610
    %v613 = vsel %vm277, %v611, 0
    %615 = vmatprep.subr.bf16.mxu0 %v373
    %616 = vmatpush1.bf16.msra.mxu0 %v372
    %617 = vmatprep.subr.bf16.mxu0 %v375
    %618 = vmatpush1.bf16.msra.mxu0 %v374
    %619 = vmatprep.subr.bf16.mxu0 %v377
    %620 = vmatpush1.bf16.msra.mxu0 %v376
    %621 = vmatprep.subr.bf16.mxu0 %v379
    %622 = vmatpush1.bf16.msra.mxu0 %v378
    %623 = vmatprep.subr.bf16.mxu0 0
    %624 = vmatpush1.bf16.msra.mxu0 0
    %625 = vmatprep.subr.bf16.mxu0 0
    %626 = vmatpush1.bf16.msra.mxu0 0
    %627 = vmatprep.subr.bf16.mxu0 0
    %628 = vmatpush1.bf16.msra.mxu0 0
    %629 = vmatprep.subr.bf16.mxu0 0
    %630 = vmatpush1.bf16.msra.mxu0 0
    %631 = vmatprep.subr.bf16.mxu0 0
    %632 = vmatpush1.bf16.msra.mxu0 0
    %633 = vmatprep.subr.bf16.mxu0 0
    %634 = vmatpush1.bf16.msra.mxu0 0
    %635 = vmatprep.subr.bf16.mxu0 0
    %636 = vmatpush1.bf16.msra.mxu0 0
    %637 = vmatprep.subr.bf16.mxu0 0
    %638 = vmatpush1.bf16.msra.mxu0 0
    %639 = vmatprep.subr.bf16.mxu0 0
    %640 = vmatpush1.bf16.msra.mxu0 0
    %641 = vmatprep.subr.bf16.mxu0 0
    %642 = vmatpush1.bf16.msra.mxu0 0
    %643 = vmatprep.subr.bf16.mxu0 0
    %644 = vmatpush1.bf16.msra.mxu0 0
    %645 = vmatprep.subr.bf16.mxu0 0
    %646 = vmatpush1.bf16.msra.mxu0 0
    %647 = vmatprep.mubr.bf16.mxu0 0
    %648 = vmatmul.mubr.bf16.gmra.mrb[0].mxu0 %v613
    %v649 = vpop.f32.mrb[0].mxu0
    %v650 = vadd.f32 0.0, %v649
    %v651 = vpop.f32.mrb[0].mxu0
    %v652 = vadd.f32 0.0, %v651
    %v653 = vpop.f32.mrb[0].mxu0
    %v654 = vpop.f32.mrb[0].mxu0
    %655 = vdwg.mxu0
    %657 = vrot.lane.b32.xlu0 %v608, 64
    %v658 = vpop.permute.xlu0 %657
    %v660 = vsel %vm277, %v658, 0
    %662 = vmatprep.subr.bf16.mxu0 %v457
    %663 = vmatpush1.bf16.msra.mxu0 %v456
    %664 = vmatprep.subr.bf16.mxu0 %v459
    %665 = vmatpush1.bf16.msra.mxu0 %v458
    %666 = vmatprep.subr.bf16.mxu0 %v461
    %667 = vmatpush1.bf16.msra.mxu0 %v460
    %668 = vmatprep.subr.bf16.mxu0 %v463
    %669 = vmatpush1.bf16.msra.mxu0 %v462
    %670 = vmatprep.subr.bf16.mxu0 0
    %671 = vmatpush1.bf16.msra.mxu0 0
    %672 = vmatprep.subr.bf16.mxu0 0
    %673 = vmatpush1.bf16.msra.mxu0 0
    %674 = vmatprep.subr.bf16.mxu0 0
    %675 = vmatpush1.bf16.msra.mxu0 0
    %676 = vmatprep.subr.bf16.mxu0 0
    %677 = vmatpush1.bf16.msra.mxu0 0
    %678 = vmatprep.subr.bf16.mxu0 0
    %679 = vmatpush1.bf16.msra.mxu0 0
    %680 = vmatprep.subr.bf16.mxu0 0
    %681 = vmatpush1.bf16.msra.mxu0 0
    %682 = vmatprep.subr.bf16.mxu0 0
    %683 = vmatpush1.bf16.msra.mxu0 0
    %684 = vmatprep.subr.bf16.mxu0 0
    %685 = vmatpush1.bf16.msra.mxu0 0
    %686 = vmatprep.subr.bf16.mxu0 0
    %687 = vmatpush1.bf16.msra.mxu0 0
    %688 = vmatprep.subr.bf16.mxu0 0
    %689 = vmatpush1.bf16.msra.mxu0 0
    %690 = vmatprep.subr.bf16.mxu0 0
    %691 = vmatpush1.bf16.msra.mxu0 0
    %692 = vmatprep.subr.bf16.mxu0 0
    %693 = vmatpush1.bf16.msra.mxu0 0
    %694 = vmatprep.mubr.bf16.mxu0 0
    %695 = vmatmul.mubr.bf16.gmra.mrb[0].mxu0 %v660
    %v696 = vpop.f32.mrb[0].mxu0
    %v697 = vadd.f32 %v650, %v696
    %v698 = vpop.f32.mrb[0].mxu0
    %v699 = vadd.f32 %v652, %v698
    %v700 = vpop.f32.mrb[0].mxu0
    %v701 = vpop.f32.mrb[0].mxu0
    %702 = vdwg.mxu0
    %v703 = vadd.f32 %v697, %v230
    %v704 = vadd.f32 %v699, %v234
    %v705 = vxor.u32 %v703, 2147483648
    %v706 = vxor.u32 %v704, 2147483648
    %v707 = vmul.f32 %v705, 1.442695
    %v708 = vpow.pop %v707
    %v709 = vmul.f32 %v706, 1.442695
    %v710 = vpow.pop %v709
    %v711 = vadd.f32 %v708, 1.0
    %v712 = vadd.f32 %v710, 1.0
    %v713 = vrcp.pop %v711
    %v714 = vmul.f32 1.0, %v713
    %v715 = vrcp.pop %v712
    %v716 = vmul.f32 1.0, %v715
    %v717 = vmul.f32 %v716, 2.0
    %v718 = vsub.f32 %v717, 1.0
    %v719 = vmul.f32 %v714, %v538
    %v720 = vmul.f32 %v714, %v718
    %722 = vrot.lane.b32.xlu0 %v720, 64
    %v723 = vpop.permute.xlu0 %722
    %v725 = vadd.f32 %v719, %v723
    %v726 = vtanh.pop %v725
    %v727 = vmul.f32 %v716, %v726
    %v728 = vpack.c.bf16 %v727, %v727
    %729 = vmatprep.subr.bf16.mxu0 %v262
    %730 = vmatpush1.bf16.msra.mxu0 %v261
    %731 = vmatprep.subr.bf16.mxu0 %v264
    %732 = vmatpush1.bf16.msra.mxu0 %v263
    %733 = vmatprep.subr.bf16.mxu0 %v266
    %734 = vmatpush1.bf16.msra.mxu0 %v265
    %735 = vmatprep.subr.bf16.mxu0 %v268
    %736 = vmatpush1.bf16.msra.mxu0 %v267
    %737 = vmatprep.subr.bf16.mxu0 0
    %738 = vmatpush1.bf16.msra.mxu0 0
    %739 = vmatprep.subr.bf16.mxu0 0
    %740 = vmatpush1.bf16.msra.mxu0 0
    %741 = vmatprep.subr.bf16.mxu0 0
    %742 = vmatpush1.bf16.msra.mxu0 0
    %743 = vmatprep.subr.bf16.mxu0 0
    %744 = vmatpush1.bf16.msra.mxu0 0
    %745 = vmatprep.subr.bf16.mxu0 0
    %746 = vmatpush1.bf16.msra.mxu0 0
    %747 = vmatprep.subr.bf16.mxu0 0
    %748 = vmatpush1.bf16.msra.mxu0 0
    %749 = vmatprep.subr.bf16.mxu0 0
    %750 = vmatpush1.bf16.msra.mxu0 0
    %751 = vmatprep.subr.bf16.mxu0 0
    %752 = vmatpush1.bf16.msra.mxu0 0
    %753 = vmatprep.subr.bf16.mxu0 0
    %754 = vmatpush1.bf16.msra.mxu0 0
    %755 = vmatprep.subr.bf16.mxu0 0
    %756 = vmatpush1.bf16.msra.mxu0 0
    %757 = vmatprep.subr.bf16.mxu0 0
    %758 = vmatpush1.bf16.msra.mxu0 0
    %759 = vmatprep.subr.bf16.mxu0 0
    %760 = vmatpush1.bf16.msra.mxu0 0
    %761 = vmatprep.mubr.bf16.mxu0 0
    %762 = vmatmul.mubr.bf16.gmra.mrb[0].mxu0 %v660
    %v763 = vpop.f32.mrb[0].mxu0
    %v764 = vadd.f32 0.0, %v763
    %v765 = vpop.f32.mrb[0].mxu0
    %v766 = vadd.f32 0.0, %v765
    %v767 = vpop.f32.mrb[0].mxu0
    %v768 = vpop.f32.mrb[0].mxu0
    %769 = vdwg.mxu0
    %v770 = vadd.f32 %v213, %v764
    %v771 = vadd.f32 %v214, %v766
    %v772 = vxor.u32 %v770, 2147483648
    %v773 = vxor.u32 %v771, 2147483648
    %v774 = vmul.f32 %v772, 1.442695
    %v775 = vpow.pop %v774
    %v776 = vmul.f32 %v773, 1.442695
    %v777 = vpow.pop %v776
    %v778 = vadd.f32 %v775, 1.0
    %v779 = vadd.f32 %v777, 1.0
    %v780 = vrcp.pop %v778
    %v781 = vmul.f32 1.0, %v780
    %v782 = vrcp.pop %v779
    %v783 = vmul.f32 1.0, %v782
    %v784 = vmul.f32 %v783, 2.0
    %v785 = vsub.f32 %v784, 1.0
    %v786 = vmul.f32 %v781, %v605
    %v787 = vmul.f32 %v781, %v785
    %789 = vrot.lane.b32.xlu0 %v787, 64
    %v790 = vpop.permute.xlu0 %789
    %v792 = vadd.f32 %v786, %v790
    %v793 = vtanh.pop %v792
    %v794 = vmul.f32 %v783, %v793
    %v795 = vpack.c.bf16 %v794, %v794
    %797 = vrot.lane.b32.xlu0 %v728, 64
    %v798 = vpop.permute.xlu0 %797
    %v800 = vsel %vm277, %v798, 0
    %802 = vmatprep.subr.bf16.mxu0 %v373
    %803 = vmatpush1.bf16.msra.mxu0 %v372
    %804 = vmatprep.subr.bf16.mxu0 %v375
    %805 = vmatpush1.bf16.msra.mxu0 %v374
    %806 = vmatprep.subr.bf16.mxu0 %v377
    %807 = vmatpush1.bf16.msra.mxu0 %v376
    %808 = vmatprep.subr.bf16.mxu0 %v379
    %809 = vmatpush1.bf16.msra.mxu0 %v378
    %810 = vmatprep.subr.bf16.mxu0 0
    %811 = vmatpush1.bf16.msra.mxu0 0
    %812 = vmatprep.subr.bf16.mxu0 0
    %813 = vmatpush1.bf16.msra.mxu0 0
    %814 = vmatprep.subr.bf16.mxu0 0
    %815 = vmatpush1.bf16.msra.mxu0 0
    %816 = vmatprep.subr.bf16.mxu0 0
    %817 = vmatpush1.bf16.msra.mxu0 0
    %818 = vmatprep.subr.bf16.mxu0 0
    %819 = vmatpush1.bf16.msra.mxu0 0
    %820 = vmatprep.subr.bf16.mxu0 0
    %821 = vmatpush1.bf16.msra.mxu0 0
    %822 = vmatprep.subr.bf16.mxu0 0
    %823 = vmatpush1.bf16.msra.mxu0 0
    %824 = vmatprep.subr.bf16.mxu0 0
    %825 = vmatpush1.bf16.msra.mxu0 0
    %826 = vmatprep.subr.bf16.mxu0 0
    %827 = vmatpush1.bf16.msra.mxu0 0
    %828 = vmatprep.subr.bf16.mxu0 0
    %829 = vmatpush1.bf16.msra.mxu0 0
    %830 = vmatprep.subr.bf16.mxu0 0
    %831 = vmatpush1.bf16.msra.mxu0 0
    %832 = vmatprep.subr.bf16.mxu0 0
    %833 = vmatpush1.bf16.msra.mxu0 0
    %834 = vmatprep.mubr.bf16.mxu0 0
    %835 = vmatmul.mubr.bf16.gmra.mrb[0].mxu0 %v800
    %v836 = vpop.f32.mrb[0].mxu0
    %v837 = vadd.f32 0.0, %v836
    %v838 = vpop.f32.mrb[0].mxu0
    %v839 = vadd.f32 0.0, %v838
    %v840 = vpop.f32.mrb[0].mxu0
    %v841 = vpop.f32.mrb[0].mxu0
    %842 = vdwg.mxu0
    %844 = vrot.lane.b32.xlu0 %v795, 64
    %v845 = vpop.permute.xlu0 %844
    %v847 = vsel %vm277, %v845, 0
    %849 = vmatprep.subr.bf16.mxu0 %v457
    %850 = vmatpush1.bf16.msra.mxu0 %v456
    %851 = vmatprep.subr.bf16.mxu0 %v459
    %852 = vmatpush1.bf16.msra.mxu0 %v458
    %853 = vmatprep.subr.bf16.mxu0 %v461
    %854 = vmatpush1.bf16.msra.mxu0 %v460
    %855 = vmatprep.subr.bf16.mxu0 %v463
    %856 = vmatpush1.bf16.msra.mxu0 %v462
    %857 = vmatprep.subr.bf16.mxu0 0
    %858 = vmatpush1.bf16.msra.mxu0 0
    %859 = vmatprep.subr.bf16.mxu0 0
    %860 = vmatpush1.bf16.msra.mxu0 0
    %861 = vmatprep.subr.bf16.mxu0 0
    %862 = vmatpush1.bf16.msra.mxu0 0
    %863 = vmatprep.subr.bf16.mxu0 0
    %864 = vmatpush1.bf16.msra.mxu0 0
    %865 = vmatprep.subr.bf16.mxu0 0
    %866 = vmatpush1.bf16.msra.mxu0 0
    %867 = vmatprep.subr.bf16.mxu0 0
    %868 = vmatpush1.bf16.msra.mxu0 0
    %869 = vmatprep.subr.bf16.mxu0 0
    %870 = vmatpush1.bf16.msra.mxu0 0
    %871 = vmatprep.subr.bf16.mxu0 0
    %872 = vmatpush1.bf16.msra.mxu0 0
    %873 = vmatprep.subr.bf16.mxu0 0
    %874 = vmatpush1.bf16.msra.mxu0 0
    %875 = vmatprep.subr.bf16.mxu0 0
    %876 = vmatpush1.bf16.msra.mxu0 0
    %877 = vmatprep.subr.bf16.mxu0 0
    %878 = vmatpush1.bf16.msra.mxu0 0
    %879 = vmatprep.subr.bf16.mxu0 0
    %880 = vmatpush1.bf16.msra.mxu0 0
    %881 = vmatprep.mubr.bf16.mxu0 0
    %882 = vmatmul.mubr.bf16.gmra.mrb[0].mxu0 %v847
    %v883 = vpop.f32.mrb[0].mxu0
    %v884 = vadd.f32 %v837, %v883
    %v885 = vpop.f32.mrb[0].mxu0
    %v886 = vadd.f32 %v839, %v885
    %v887 = vpop.f32.mrb[0].mxu0
    %v888 = vpop.f32.mrb[0].mxu0
    %889 = vdwg.mxu0
    %v890 = vadd.f32 %v884, %v230
    %v891 = vadd.f32 %v886, %v234
    %v892 = vxor.u32 %v890, 2147483648
    %v893 = vxor.u32 %v891, 2147483648
    %v894 = vmul.f32 %v892, 1.442695
    %v895 = vpow.pop %v894
    %v896 = vmul.f32 %v893, 1.442695
    %v897 = vpow.pop %v896
    %v898 = vadd.f32 %v895, 1.0
    %v899 = vadd.f32 %v897, 1.0
    %v900 = vrcp.pop %v898
    %v901 = vmul.f32 1.0, %v900
    %v902 = vrcp.pop %v899
    %v903 = vmul.f32 1.0, %v902
    %v904 = vmul.f32 %v903, 2.0
    %v905 = vsub.f32 %v904, 1.0
    %v906 = vmul.f32 %v901, %v725
    %v907 = vmul.f32 %v901, %v905
    %909 = vrot.lane.b32.xlu0 %v907, 64
    %v910 = vpop.permute.xlu0 %909
    %v912 = vadd.f32 %v906, %v910
    %v913 = vtanh.pop %v912
    %v914 = vmul.f32 %v903, %v913
    %v915 = vpack.c.bf16 %v914, %v914
    %916 = vmatprep.subr.bf16.mxu0 %v262
    %917 = vmatpush1.bf16.msra.mxu0 %v261
    %918 = vmatprep.subr.bf16.mxu0 %v264
    %919 = vmatpush1.bf16.msra.mxu0 %v263
    %920 = vmatprep.subr.bf16.mxu0 %v266
    %921 = vmatpush1.bf16.msra.mxu0 %v265
    %922 = vmatprep.subr.bf16.mxu0 %v268
    %923 = vmatpush1.bf16.msra.mxu0 %v267
    %924 = vmatprep.subr.bf16.mxu0 0
    %925 = vmatpush1.bf16.msra.mxu0 0
    %926 = vmatprep.subr.bf16.mxu0 0
    %927 = vmatpush1.bf16.msra.mxu0 0
    %928 = vmatprep.subr.bf16.mxu0 0
    %929 = vmatpush1.bf16.msra.mxu0 0
    %930 = vmatprep.subr.bf16.mxu0 0
    %931 = vmatpush1.bf16.msra.mxu0 0
    %932 = vmatprep.subr.bf16.mxu0 0
    %933 = vmatpush1.bf16.msra.mxu0 0
    %934 = vmatprep.subr.bf16.mxu0 0
    %935 = vmatpush1.bf16.msra.mxu0 0
    %936 = vmatprep.subr.bf16.mxu0 0
    %937 = vmatpush1.bf16.msra.mxu0 0
    %938 = vmatprep.subr.bf16.mxu0 0
    %939 = vmatpush1.bf16.msra.mxu0 0
    %940 = vmatprep.subr.bf16.mxu0 0
    %941 = vmatpush1.bf16.msra.mxu0 0
    %942 = vmatprep.subr.bf16.mxu0 0
    %943 = vmatpush1.bf16.msra.mxu0 0
    %944 = vmatprep.subr.bf16.mxu0 0
    %945 = vmatpush1.bf16.msra.mxu0 0
    %946 = vmatprep.subr.bf16.mxu0 0
    %947 = vmatpush1.bf16.msra.mxu0 0
    %948 = vmatprep.mubr.bf16.mxu0 0
    %949 = vmatmul.mubr.bf16.gmra.mrb[0].mxu0 %v847
    %v950 = vpop.f32.mrb[0].mxu0
    %v951 = vadd.f32 0.0, %v950
    %v952 = vpop.f32.mrb[0].mxu0
    %v953 = vadd.f32 0.0, %v952
    %v954 = vpop.f32.mrb[0].mxu0
    %v955 = vpop.f32.mrb[0].mxu0
    %956 = vdwg.mxu0
    %v957 = vadd.f32 %v215, %v951
    %v958 = vadd.f32 %v216, %v953
    %v959 = vxor.u32 %v957, 2147483648
    %v960 = vxor.u32 %v958, 2147483648
    %v961 = vmul.f32 %v959, 1.442695
    %v962 = vpow.pop %v961
    %v963 = vmul.f32 %v960, 1.442695
    %v964 = vpow.pop %v963
    %v965 = vadd.f32 %v962, 1.0
    %v966 = vadd.f32 %v964, 1.0
    %v967 = vrcp.pop %v965
    %v968 = vmul.f32 1.0, %v967
    %v969 = vrcp.pop %v966
    %v970 = vmul.f32 1.0, %v969
    %v971 = vmul.f32 %v970, 2.0
    %v972 = vsub.f32 %v971, 1.0
    %v973 = vmul.f32 %v968, %v792
    %v974 = vmul.f32 %v968, %v972
    %976 = vrot.lane.b32.xlu0 %v974, 64
    %v977 = vpop.permute.xlu0 %976
    %v979 = vadd.f32 %v973, %v977
    %v980 = vtanh.pop %v979
    %v981 = vmul.f32 %v970, %v980
    %v982 = vpack.c.bf16 %v981, %v981
    %984 = vrot.lane.b32.xlu0 %v915, 64
    %v985 = vpop.permute.xlu0 %984
    %v987 = vsel %vm277, %v985, 0
    %989 = vmatprep.subr.bf16.mxu0 %v373
    %990 = vmatpush1.bf16.msra.mxu0 %v372
    %991 = vmatprep.subr.bf16.mxu0 %v375
    %992 = vmatpush1.bf16.msra.mxu0 %v374
    %993 = vmatprep.subr.bf16.mxu0 %v377
    %994 = vmatpush1.bf16.msra.mxu0 %v376
    %995 = vmatprep.subr.bf16.mxu0 %v379
    %996 = vmatpush1.bf16.msra.mxu0 %v378
    %997 = vmatprep.subr.bf16.mxu0 0
    %998 = vmatpush1.bf16.msra.mxu0 0
    %999 = vmatprep.subr.bf16.mxu0 0
    %1000 = vmatpush1.bf16.msra.mxu0 0
    %1001 = vmatprep.subr.bf16.mxu0 0
    %1002 = vmatpush1.bf16.msra.mxu0 0
    %1003 = vmatprep.subr.bf16.mxu0 0
    %1004 = vmatpush1.bf16.msra.mxu0 0
    %1005 = vmatprep.subr.bf16.mxu0 0
    %1006 = vmatpush1.bf16.msra.mxu0 0
    %1007 = vmatprep.subr.bf16.mxu0 0
    %1008 = vmatpush1.bf16.msra.mxu0 0
    %1009 = vmatprep.subr.bf16.mxu0 0
    %1010 = vmatpush1.bf16.msra.mxu0 0
    %1011 = vmatprep.subr.bf16.mxu0 0
    %1012 = vmatpush1.bf16.msra.mxu0 0
    %1013 = vmatprep.subr.bf16.mxu0 0
    %1014 = vmatpush1.bf16.msra.mxu0 0
    %1015 = vmatprep.subr.bf16.mxu0 0
    %1016 = vmatpush1.bf16.msra.mxu0 0
    %1017 = vmatprep.subr.bf16.mxu0 0
    %1018 = vmatpush1.bf16.msra.mxu0 0
    %1019 = vmatprep.subr.bf16.mxu0 0
    %1020 = vmatpush1.bf16.msra.mxu0 0
    %1021 = vmatprep.mubr.bf16.mxu0 0
    %1022 = vmatmul.mubr.bf16.gmra.mrb[0].mxu0 %v987
    %v1023 = vpop.f32.mrb[0].mxu0
    %v1024 = vadd.f32 0.0, %v1023
    %v1025 = vpop.f32.mrb[0].mxu0
    %v1026 = vadd.f32 0.0, %v1025
    %v1027 = vpop.f32.mrb[0].mxu0
    %v1028 = vpop.f32.mrb[0].mxu0
    %1029 = vdwg.mxu0
    %1031 = vrot.lane.b32.xlu0 %v982, 64
    %v1032 = vpop.permute.xlu0 %1031
    %v1034 = vsel %vm277, %v1032, 0
    %1036 = vmatprep.subr.bf16.mxu0 %v457
    %1037 = vmatpush1.bf16.msra.mxu0 %v456
    %1038 = vmatprep.subr.bf16.mxu0 %v459
    %1039 = vmatpush1.bf16.msra.mxu0 %v458
    %1040 = vmatprep.subr.bf16.mxu0 %v461
    %1041 = vmatpush1.bf16.msra.mxu0 %v460
    %1042 = vmatprep.subr.bf16.mxu0 %v463
    %1043 = vmatpush1.bf16.msra.mxu0 %v462
    %1044 = vmatprep.subr.bf16.mxu0 0
    %1045 = vmatpush1.bf16.msra.mxu0 0
    %1046 = vmatprep.subr.bf16.mxu0 0
    %1047 = vmatpush1.bf16.msra.mxu0 0
    %1048 = vmatprep.subr.bf16.mxu0 0
    %1049 = vmatpush1.bf16.msra.mxu0 0
    %1050 = vmatprep.subr.bf16.mxu0 0
    %1051 = vmatpush1.bf16.msra.mxu0 0
    %1052 = vmatprep.subr.bf16.mxu0 0
    %1053 = vmatpush1.bf16.msra.mxu0 0
    %1054 = vmatprep.subr.bf16.mxu0 0
    %1055 = vmatpush1.bf16.msra.mxu0 0
    %1056 = vmatprep.subr.bf16.mxu0 0
    %1057 = vmatpush1.bf16.msra.mxu0 0
    %1058 = vmatprep.subr.bf16.mxu0 0
    %1059 = vmatpush1.bf16.msra.mxu0 0
    %1060 = vmatprep.subr.bf16.mxu0 0
    %1061 = vmatpush1.bf16.msra.mxu0 0
    %1062 = vmatprep.subr.bf16.mxu0 0
    %1063 = vmatpush1.bf16.msra.mxu0 0
    %1064 = vmatprep.subr.bf16.mxu0 0
    %1065 = vmatpush1.bf16.msra.mxu0 0
    %1066 = vmatprep.subr.bf16.mxu0 0
    %1067 = vmatpush1.bf16.msra.mxu0 0
    %1068 = vmatprep.mubr.bf16.mxu0 0
    %1069 = vmatmul.mubr.bf16.gmra.mrb[0].mxu0 %v1034
    %v1070 = vpop.f32.mrb[0].mxu0
    %v1071 = vadd.f32 %v1024, %v1070
    %v1072 = vpop.f32.mrb[0].mxu0
    %v1073 = vadd.f32 %v1026, %v1072
    %v1074 = vpop.f32.mrb[0].mxu0
    %v1075 = vpop.f32.mrb[0].mxu0
    %1076 = vdwg.mxu0
    %v1077 = vadd.f32 %v1071, %v230
    %v1078 = vadd.f32 %v1073, %v234
    %v1079 = vxor.u32 %v1077, 2147483648
    %v1080 = vxor.u32 %v1078, 2147483648
    %v1081 = vmul.f32 %v1079, 1.442695
    %v1082 = vpow.pop %v1081
    %v1083 = vmul.f32 %v1080, 1.442695
    %v1084 = vpow.pop %v1083
    %v1085 = vadd.f32 %v1082, 1.0
    %v1086 = vadd.f32 %v1084, 1.0
    %v1087 = vrcp.pop %v1085
    %v1088 = vmul.f32 1.0, %v1087
    %v1089 = vrcp.pop %v1086
    %v1090 = vmul.f32 1.0, %v1089
    %v1091 = vmul.f32 %v1090, 2.0
    %v1092 = vsub.f32 %v1091, 1.0
    %v1093 = vmul.f32 %v1088, %v912
    %v1094 = vmul.f32 %v1088, %v1092
    %1096 = vrot.lane.b32.xlu0 %v1094, 64
    %v1097 = vpop.permute.xlu0 %1096
    %v1099 = vadd.f32 %v1093, %v1097
    %v1100 = vtanh.pop %v1099
    %v1101 = vmul.f32 %v1090, %v1100
    %v1102 = vpack.c.bf16 %v1101, %v1101
    %1103 = vmatprep.subr.bf16.mxu0 %v262
    %1104 = vmatpush1.bf16.msra.mxu0 %v261
    %1105 = vmatprep.subr.bf16.mxu0 %v264
    %1106 = vmatpush1.bf16.msra.mxu0 %v263
    %1107 = vmatprep.subr.bf16.mxu0 %v266
    %1108 = vmatpush1.bf16.msra.mxu0 %v265
    %1109 = vmatprep.subr.bf16.mxu0 %v268
    %1110 = vmatpush1.bf16.msra.mxu0 %v267
    %1111 = vmatprep.subr.bf16.mxu0 0
    %1112 = vmatpush1.bf16.msra.mxu0 0
    %1113 = vmatprep.subr.bf16.mxu0 0
    %1114 = vmatpush1.bf16.msra.mxu0 0
    %1115 = vmatprep.subr.bf16.mxu0 0
    %1116 = vmatpush1.bf16.msra.mxu0 0
    %1117 = vmatprep.subr.bf16.mxu0 0
    %1118 = vmatpush1.bf16.msra.mxu0 0
    %1119 = vmatprep.subr.bf16.mxu0 0
    %1120 = vmatpush1.bf16.msra.mxu0 0
    %1121 = vmatprep.subr.bf16.mxu0 0
    %1122 = vmatpush1.bf16.msra.mxu0 0
    %1123 = vmatprep.subr.bf16.mxu0 0
    %1124 = vmatpush1.bf16.msra.mxu0 0
    %1125 = vmatprep.subr.bf16.mxu0 0
    %1126 = vmatpush1.bf16.msra.mxu0 0
    %1127 = vmatprep.subr.bf16.mxu0 0
    %1128 = vmatpush1.bf16.msra.mxu0 0
    %1129 = vmatprep.subr.bf16.mxu0 0
    %1130 = vmatpush1.bf16.msra.mxu0 0
    %1131 = vmatprep.subr.bf16.mxu0 0
    %1132 = vmatpush1.bf16.msra.mxu0 0
    %1133 = vmatprep.subr.bf16.mxu0 0
    %1134 = vmatpush1.bf16.msra.mxu0 0
    %1135 = vmatprep.mubr.bf16.mxu0 0
    %1136 = vmatmul.mubr.bf16.gmra.mrb[0].mxu0 %v1034
    %v1137 = vpop.f32.mrb[0].mxu0
    %v1138 = vadd.f32 0.0, %v1137
    %v1139 = vpop.f32.mrb[0].mxu0
    %v1140 = vadd.f32 0.0, %v1139
    %v1141 = vpop.f32.mrb[0].mxu0
    %v1142 = vpop.f32.mrb[0].mxu0
    %1143 = vdwg.mxu0
    %v1144 = vadd.f32 %v217, %v1138
    %v1145 = vadd.f32 %v218, %v1140
    %v1146 = vxor.u32 %v1144, 2147483648
    %v1147 = vxor.u32 %v1145, 2147483648
    %v1148 = vmul.f32 %v1146, 1.442695
    %v1149 = vpow.pop %v1148
    %v1150 = vmul.f32 %v1147, 1.442695
    %v1151 = vpow.pop %v1150
    %v1152 = vadd.f32 %v1149, 1.0
    %v1153 = vadd.f32 %v1151, 1.0
    %v1154 = vrcp.pop %v1152
    %v1155 = vmul.f32 1.0, %v1154
    %v1156 = vrcp.pop %v1153
    %v1157 = vmul.f32 1.0, %v1156
    %v1158 = vmul.f32 %v1157, 2.0
    %v1159 = vsub.f32 %v1158, 1.0
    %v1160 = vmul.f32 %v1155, %v979
    %v1161 = vmul.f32 %v1155, %v1159
    %1163 = vrot.lane.b32.xlu0 %v1161, 64
    %v1164 = vpop.permute.xlu0 %1163
    %v1166 = vadd.f32 %v1160, %v1164
    %v1167 = vtanh.pop %v1166
    %v1168 = vmul.f32 %v1157, %v1167
    %v1169 = vpack.c.bf16 %v1168, %v1168
    %1171 = vrot.lane.b32.xlu0 %v1102, 64
    %v1172 = vpop.permute.xlu0 %1171
    %v1174 = vsel %vm277, %v1172, 0
    %1176 = vmatprep.subr.bf16.mxu0 %v373
    %1177 = vmatpush1.bf16.msra.mxu0 %v372
    %1178 = vmatprep.subr.bf16.mxu0 %v375
    %1179 = vmatpush1.bf16.msra.mxu0 %v374
    %1180 = vmatprep.subr.bf16.mxu0 %v377
    %1181 = vmatpush1.bf16.msra.mxu0 %v376
    %1182 = vmatprep.subr.bf16.mxu0 %v379
    %1183 = vmatpush1.bf16.msra.mxu0 %v378
    %1184 = vmatprep.subr.bf16.mxu0 0
    %1185 = vmatpush1.bf16.msra.mxu0 0
    %1186 = vmatprep.subr.bf16.mxu0 0
    %1187 = vmatpush1.bf16.msra.mxu0 0
    %1188 = vmatprep.subr.bf16.mxu0 0
    %1189 = vmatpush1.bf16.msra.mxu0 0
    %1190 = vmatprep.subr.bf16.mxu0 0
    %1191 = vmatpush1.bf16.msra.mxu0 0
    %1192 = vmatprep.subr.bf16.mxu0 0
    %1193 = vmatpush1.bf16.msra.mxu0 0
    %1194 = vmatprep.subr.bf16.mxu0 0
    %1195 = vmatpush1.bf16.msra.mxu0 0
    %1196 = vmatprep.subr.bf16.mxu0 0
    %1197 = vmatpush1.bf16.msra.mxu0 0
    %1198 = vmatprep.subr.bf16.mxu0 0
    %1199 = vmatpush1.bf16.msra.mxu0 0
    %1200 = vmatprep.subr.bf16.mxu0 0
    %1201 = vmatpush1.bf16.msra.mxu0 0
    %1202 = vmatprep.subr.bf16.mxu0 0
    %1203 = vmatpush1.bf16.msra.mxu0 0
    %1204 = vmatprep.subr.bf16.mxu0 0
    %1205 = vmatpush1.bf16.msra.mxu0 0
    %1206 = vmatprep.subr.bf16.mxu0 0
    %1207 = vmatpush1.bf16.msra.mxu0 0
    %1208 = vmatprep.mubr.bf16.mxu0 0
    %1209 = vmatmul.mubr.bf16.gmra.mrb[0].mxu0 %v1174
    %v1210 = vpop.f32.mrb[0].mxu0
    %v1211 = vadd.f32 0.0, %v1210
    %v1212 = vpop.f32.mrb[0].mxu0
    %v1213 = vadd.f32 0.0, %v1212
    %v1214 = vpop.f32.mrb[0].mxu0
    %v1215 = vpop.f32.mrb[0].mxu0
    %1216 = vdwg.mxu0
    %1218 = vrot.lane.b32.xlu0 %v1169, 64
    %v1219 = vpop.permute.xlu0 %1218
    %v1221 = vsel %vm277, %v1219, 0
    %1223 = vmatprep.subr.bf16.mxu0 %v457
    %1224 = vmatpush1.bf16.msra.mxu0 %v456
    %1225 = vmatprep.subr.bf16.mxu0 %v459
    %1226 = vmatpush1.bf16.msra.mxu0 %v458
    %1227 = vmatprep.subr.bf16.mxu0 %v461
    %1228 = vmatpush1.bf16.msra.mxu0 %v460
    %1229 = vmatprep.subr.bf16.mxu0 %v463
    %1230 = vmatpush1.bf16.msra.mxu0 %v462
    %1231 = vmatprep.subr.bf16.mxu0 0
    %1232 = vmatpush1.bf16.msra.mxu0 0
    %1233 = vmatprep.subr.bf16.mxu0 0
    %1234 = vmatpush1.bf16.msra.mxu0 0
    %1235 = vmatprep.subr.bf16.mxu0 0
    %1236 = vmatpush1.bf16.msra.mxu0 0
    %1237 = vmatprep.subr.bf16.mxu0 0
    %1238 = vmatpush1.bf16.msra.mxu0 0
    %1239 = vmatprep.subr.bf16.mxu0 0
    %1240 = vmatpush1.bf16.msra.mxu0 0
    %1241 = vmatprep.subr.bf16.mxu0 0
    %1242 = vmatpush1.bf16.msra.mxu0 0
    %1243 = vmatprep.subr.bf16.mxu0 0
    %1244 = vmatpush1.bf16.msra.mxu0 0
    %1245 = vmatprep.subr.bf16.mxu0 0
    %1246 = vmatpush1.bf16.msra.mxu0 0
    %1247 = vmatprep.subr.bf16.mxu0 0
    %1248 = vmatpush1.bf16.msra.mxu0 0
    %1249 = vmatprep.subr.bf16.mxu0 0
    %1250 = vmatpush1.bf16.msra.mxu0 0
    %1251 = vmatprep.subr.bf16.mxu0 0
    %1252 = vmatpush1.bf16.msra.mxu0 0
    %1253 = vmatprep.subr.bf16.mxu0 0
    %1254 = vmatpush1.bf16.msra.mxu0 0
    %1255 = vmatprep.mubr.bf16.mxu0 0
    %1256 = vmatmul.mubr.bf16.gmra.mrb[0].mxu0 %v1221
    %v1257 = vpop.f32.mrb[0].mxu0
    %v1258 = vadd.f32 %v1211, %v1257
    %v1259 = vpop.f32.mrb[0].mxu0
    %v1260 = vadd.f32 %v1213, %v1259
    %v1261 = vpop.f32.mrb[0].mxu0
    %v1262 = vpop.f32.mrb[0].mxu0
    %1263 = vdwg.mxu0
    %v1264 = vadd.f32 %v1258, %v230
    %v1265 = vadd.f32 %v1260, %v234
    %v1266 = vxor.u32 %v1264, 2147483648
    %v1267 = vxor.u32 %v1265, 2147483648
    %v1268 = vmul.f32 %v1266, 1.442695
    %v1269 = vpow.pop %v1268
    %v1270 = vmul.f32 %v1267, 1.442695
    %v1271 = vpow.pop %v1270
    %v1272 = vadd.f32 %v1269, 1.0
    %v1273 = vadd.f32 %v1271, 1.0
    %v1274 = vrcp.pop %v1272
    %v1275 = vmul.f32 1.0, %v1274
    %v1276 = vrcp.pop %v1273
    %v1277 = vmul.f32 1.0, %v1276
    %v1278 = vmul.f32 %v1277, 2.0
    %v1279 = vsub.f32 %v1278, 1.0
    %v1280 = vmul.f32 %v1275, %v1099
    %v1281 = vmul.f32 %v1275, %v1279
    %1283 = vrot.lane.b32.xlu0 %v1281, 64
    %v1284 = vpop.permute.xlu0 %1283
    %v1286 = vadd.f32 %v1280, %v1284
    %v1287 = vtanh.pop %v1286
    %v1288 = vmul.f32 %v1277, %v1287
    %v1289 = vpack.c.bf16 %v1288, %v1288
    %1290 = vmatprep.subr.bf16.mxu0 %v262
    %1291 = vmatpush1.bf16.msra.mxu0 %v261
    %1292 = vmatprep.subr.bf16.mxu0 %v264
    %1293 = vmatpush1.bf16.msra.mxu0 %v263
    %1294 = vmatprep.subr.bf16.mxu0 %v266
    %1295 = vmatpush1.bf16.msra.mxu0 %v265
    %1296 = vmatprep.subr.bf16.mxu0 %v268
    %1297 = vmatpush1.bf16.msra.mxu0 %v267
    %1298 = vmatprep.subr.bf16.mxu0 0
    %1299 = vmatpush1.bf16.msra.mxu0 0
    %1300 = vmatprep.subr.bf16.mxu0 0
    %1301 = vmatpush1.bf16.msra.mxu0 0
    %1302 = vmatprep.subr.bf16.mxu0 0
    %1303 = vmatpush1.bf16.msra.mxu0 0
    %1304 = vmatprep.subr.bf16.mxu0 0
    %1305 = vmatpush1.bf16.msra.mxu0 0
    %1306 = vmatprep.subr.bf16.mxu0 0
    %1307 = vmatpush1.bf16.msra.mxu0 0
    %1308 = vmatprep.subr.bf16.mxu0 0
    %1309 = vmatpush1.bf16.msra.mxu0 0
    %1310 = vmatprep.subr.bf16.mxu0 0
    %1311 = vmatpush1.bf16.msra.mxu0 0
    %1312 = vmatprep.subr.bf16.mxu0 0
    %1313 = vmatpush1.bf16.msra.mxu0 0
    %1314 = vmatprep.subr.bf16.mxu0 0
    %1315 = vmatpush1.bf16.msra.mxu0 0
    %1316 = vmatprep.subr.bf16.mxu0 0
    %1317 = vmatpush1.bf16.msra.mxu0 0
    %1318 = vmatprep.subr.bf16.mxu0 0
    %1319 = vmatpush1.bf16.msra.mxu0 0
    %1320 = vmatprep.subr.bf16.mxu0 0
    %1321 = vmatpush1.bf16.msra.mxu0 0
    %1322 = vmatprep.mubr.bf16.mxu0 0
    %1323 = vmatmul.mubr.bf16.gmra.mrb[0].mxu0 %v1221
    %v1324 = vpop.f32.mrb[0].mxu0
    %v1325 = vadd.f32 0.0, %v1324
    %v1326 = vpop.f32.mrb[0].mxu0
    %v1327 = vadd.f32 0.0, %v1326
    %v1328 = vpop.f32.mrb[0].mxu0
    %v1329 = vpop.f32.mrb[0].mxu0
    %1330 = vdwg.mxu0
    %v1331 = vadd.f32 %v219, %v1325
    %v1332 = vadd.f32 %v220, %v1327
    %v1333 = vxor.u32 %v1331, 2147483648
    %v1334 = vxor.u32 %v1332, 2147483648
    %v1335 = vmul.f32 %v1333, 1.442695
    %v1336 = vpow.pop %v1335
    %v1337 = vmul.f32 %v1334, 1.442695
    %v1338 = vpow.pop %v1337
    %v1339 = vadd.f32 %v1336, 1.0
    %v1340 = vadd.f32 %v1338, 1.0
    %v1341 = vrcp.pop %v1339
    %v1342 = vmul.f32 1.0, %v1341
    %v1343 = vrcp.pop %v1340
    %v1344 = vmul.f32 1.0, %v1343
    %v1345 = vmul.f32 %v1344, 2.0
    %v1346 = vsub.f32 %v1345, 1.0
    %v1347 = vmul.f32 %v1342, %v1166
    %v1348 = vmul.f32 %v1342, %v1346
    %1350 = vrot.lane.b32.xlu0 %v1348, 64
    %v1351 = vpop.permute.xlu0 %1350
    %v1353 = vadd.f32 %v1347, %v1351
    %v1354 = vtanh.pop %v1353
    %v1355 = vmul.f32 %v1344, %v1354
    %v1356 = vpack.c.bf16 %v1355, %v1355
    %1358 = vrot.lane.b32.xlu0 %v1289, 64
    %v1359 = vpop.permute.xlu0 %1358
    %v1361 = vsel %vm277, %v1359, 0
    %1363 = vmatprep.subr.bf16.mxu0 %v373
    %1364 = vmatpush1.bf16.msra.mxu0 %v372
    %1365 = vmatprep.subr.bf16.mxu0 %v375
    %1366 = vmatpush1.bf16.msra.mxu0 %v374
    %1367 = vmatprep.subr.bf16.mxu0 %v377
    %1368 = vmatpush1.bf16.msra.mxu0 %v376
    %1369 = vmatprep.subr.bf16.mxu0 %v379
    %1370 = vmatpush1.bf16.msra.mxu0 %v378
    %1371 = vmatprep.subr.bf16.mxu0 0
    %1372 = vmatpush1.bf16.msra.mxu0 0
    %1373 = vmatprep.subr.bf16.mxu0 0
    %1374 = vmatpush1.bf16.msra.mxu0 0
    %1375 = vmatprep.subr.bf16.mxu0 0
    %1376 = vmatpush1.bf16.msra.mxu0 0
    %1377 = vmatprep.subr.bf16.mxu0 0
    %1378 = vmatpush1.bf16.msra.mxu0 0
    %1379 = vmatprep.subr.bf16.mxu0 0
    %1380 = vmatpush1.bf16.msra.mxu0 0
    %1381 = vmatprep.subr.bf16.mxu0 0
    %1382 = vmatpush1.bf16.msra.mxu0 0
    %1383 = vmatprep.subr.bf16.mxu0 0
    %1384 = vmatpush1.bf16.msra.mxu0 0
    %1385 = vmatprep.subr.bf16.mxu0 0
    %1386 = vmatpush1.bf16.msra.mxu0 0
    %1387 = vmatprep.subr.bf16.mxu0 0
    %1388 = vmatpush1.bf16.msra.mxu0 0
    %1389 = vmatprep.subr.bf16.mxu0 0
    %1390 = vmatpush1.bf16.msra.mxu0 0
    %1391 = vmatprep.subr.bf16.mxu0 0
    %1392 = vmatpush1.bf16.msra.mxu0 0
    %1393 = vmatprep.subr.bf16.mxu0 0
    %1394 = vmatpush1.bf16.msra.mxu0 0
    %1395 = vmatprep.mubr.bf16.mxu0 0
    %1396 = vmatmul.mubr.bf16.gmra.mrb[0].mxu0 %v1361
    %v1397 = vpop.f32.mrb[0].mxu0
    %v1398 = vadd.f32 0.0, %v1397
    %v1399 = vpop.f32.mrb[0].mxu0
    %v1400 = vadd.f32 0.0, %v1399
    %v1401 = vpop.f32.mrb[0].mxu0
    %v1402 = vpop.f32.mrb[0].mxu0
    %1403 = vdwg.mxu0
    %1405 = vrot.lane.b32.xlu0 %v1356, 64
    %v1406 = vpop.permute.xlu0 %1405
    %v1408 = vsel %vm277, %v1406, 0
    %1410 = vmatprep.subr.bf16.mxu0 %v457
    %1411 = vmatpush1.bf16.msra.mxu0 %v456
    %1412 = vmatprep.subr.bf16.mxu0 %v459
    %1413 = vmatpush1.bf16.msra.mxu0 %v458
    %1414 = vmatprep.subr.bf16.mxu0 %v461
    %1415 = vmatpush1.bf16.msra.mxu0 %v460
    %1416 = vmatprep.subr.bf16.mxu0 %v463
    %1417 = vmatpush1.bf16.msra.mxu0 %v462
    %1418 = vmatprep.subr.bf16.mxu0 0
    %1419 = vmatpush1.bf16.msra.mxu0 0
    %1420 = vmatprep.subr.bf16.mxu0 0
    %1421 = vmatpush1.bf16.msra.mxu0 0
    %1422 = vmatprep.subr.bf16.mxu0 0
    %1423 = vmatpush1.bf16.msra.mxu0 0
    %1424 = vmatprep.subr.bf16.mxu0 0
    %1425 = vmatpush1.bf16.msra.mxu0 0
    %1426 = vmatprep.subr.bf16.mxu0 0
    %1427 = vmatpush1.bf16.msra.mxu0 0
    %1428 = vmatprep.subr.bf16.mxu0 0
    %1429 = vmatpush1.bf16.msra.mxu0 0
    %1430 = vmatprep.subr.bf16.mxu0 0
    %1431 = vmatpush1.bf16.msra.mxu0 0
    %1432 = vmatprep.subr.bf16.mxu0 0
    %1433 = vmatpush1.bf16.msra.mxu0 0
    %1434 = vmatprep.subr.bf16.mxu0 0
    %1435 = vmatpush1.bf16.msra.mxu0 0
    %1436 = vmatprep.subr.bf16.mxu0 0
    %1437 = vmatpush1.bf16.msra.mxu0 0
    %1438 = vmatprep.subr.bf16.mxu0 0
    %1439 = vmatpush1.bf16.msra.mxu0 0
    %1440 = vmatprep.subr.bf16.mxu0 0
    %1441 = vmatpush1.bf16.msra.mxu0 0
    %1442 = vmatprep.mubr.bf16.mxu0 0
    %1443 = vmatmul.mubr.bf16.gmra.mrb[0].mxu0 %v1408
    %v1444 = vpop.f32.mrb[0].mxu0
    %v1445 = vadd.f32 %v1398, %v1444
    %v1446 = vpop.f32.mrb[0].mxu0
    %v1447 = vadd.f32 %v1400, %v1446
    %v1448 = vpop.f32.mrb[0].mxu0
    %v1449 = vpop.f32.mrb[0].mxu0
    %1450 = vdwg.mxu0
    %v1451 = vadd.f32 %v1445, %v230
    %v1452 = vadd.f32 %v1447, %v234
    %v1453 = vxor.u32 %v1451, 2147483648
    %v1454 = vxor.u32 %v1452, 2147483648
    %v1455 = vmul.f32 %v1453, 1.442695
    %v1456 = vpow.pop %v1455
    %v1457 = vmul.f32 %v1454, 1.442695
    %v1458 = vpow.pop %v1457
    %v1459 = vadd.f32 %v1456, 1.0
    %v1460 = vadd.f32 %v1458, 1.0
    %v1461 = vrcp.pop %v1459
    %v1462 = vmul.f32 1.0, %v1461
    %v1463 = vrcp.pop %v1460
    %v1464 = vmul.f32 1.0, %v1463
    %v1465 = vmul.f32 %v1464, 2.0
    %v1466 = vsub.f32 %v1465, 1.0
    %v1467 = vmul.f32 %v1462, %v1286
    %v1468 = vmul.f32 %v1462, %v1466
    %1470 = vrot.lane.b32.xlu0 %v1468, 64
    %v1471 = vpop.permute.xlu0 %1470
    %v1473 = vadd.f32 %v1467, %v1471
    %v1474 = vtanh.pop %v1473
    %v1475 = vmul.f32 %v1464, %v1474
    %v1476 = vpack.c.bf16 %v1475, %v1475
    %1477 = vmatprep.subr.bf16.mxu0 %v262
    %1478 = vmatpush1.bf16.msra.mxu0 %v261
    %1479 = vmatprep.subr.bf16.mxu0 %v264
    %1480 = vmatpush1.bf16.msra.mxu0 %v263
    %1481 = vmatprep.subr.bf16.mxu0 %v266
    %1482 = vmatpush1.bf16.msra.mxu0 %v265
    %1483 = vmatprep.subr.bf16.mxu0 %v268
    %1484 = vmatpush1.bf16.msra.mxu0 %v267
    %1485 = vmatprep.subr.bf16.mxu0 0
    %1486 = vmatpush1.bf16.msra.mxu0 0
    %1487 = vmatprep.subr.bf16.mxu0 0
    %1488 = vmatpush1.bf16.msra.mxu0 0
    %1489 = vmatprep.subr.bf16.mxu0 0
    %1490 = vmatpush1.bf16.msra.mxu0 0
    %1491 = vmatprep.subr.bf16.mxu0 0
    %1492 = vmatpush1.bf16.msra.mxu0 0
    %1493 = vmatprep.subr.bf16.mxu0 0
    %1494 = vmatpush1.bf16.msra.mxu0 0
    %1495 = vmatprep.subr.bf16.mxu0 0
    %1496 = vmatpush1.bf16.msra.mxu0 0
    %1497 = vmatprep.subr.bf16.mxu0 0
    %1498 = vmatpush1.bf16.msra.mxu0 0
    %1499 = vmatprep.subr.bf16.mxu0 0
    %1500 = vmatpush1.bf16.msra.mxu0 0
    %1501 = vmatprep.subr.bf16.mxu0 0
    %1502 = vmatpush1.bf16.msra.mxu0 0
    %1503 = vmatprep.subr.bf16.mxu0 0
    %1504 = vmatpush1.bf16.msra.mxu0 0
    %1505 = vmatprep.subr.bf16.mxu0 0
    %1506 = vmatpush1.bf16.msra.mxu0 0
    %1507 = vmatprep.subr.bf16.mxu0 0
    %1508 = vmatpush1.bf16.msra.mxu0 0
    %1509 = vmatprep.mubr.bf16.mxu0 0
    %1510 = vmatmul.mubr.bf16.gmra.mrb[0].mxu0 %v1408
    %v1511 = vpop.f32.mrb[0].mxu0
    %v1512 = vadd.f32 0.0, %v1511
    %v1513 = vpop.f32.mrb[0].mxu0
    %v1514 = vadd.f32 0.0, %v1513
    %v1515 = vpop.f32.mrb[0].mxu0
    %v1516 = vpop.f32.mrb[0].mxu0
    %1517 = vdwg.mxu0
    %v1518 = vadd.f32 %v221, %v1512
    %v1519 = vadd.f32 %v222, %v1514
    %v1520 = vxor.u32 %v1518, 2147483648
    %v1521 = vxor.u32 %v1519, 2147483648
    %v1522 = vmul.f32 %v1520, 1.442695
    %v1523 = vpow.pop %v1522
    %v1524 = vmul.f32 %v1521, 1.442695
    %v1525 = vpow.pop %v1524
    %v1526 = vadd.f32 %v1523, 1.0
    %v1527 = vadd.f32 %v1525, 1.0
    %v1528 = vrcp.pop %v1526
    %v1529 = vmul.f32 1.0, %v1528
    %v1530 = vrcp.pop %v1527
    %v1531 = vmul.f32 1.0, %v1530
    %v1532 = vmul.f32 %v1531, 2.0
    %v1533 = vsub.f32 %v1532, 1.0
    %v1534 = vmul.f32 %v1529, %v1353
    %v1535 = vmul.f32 %v1529, %v1533
    %1537 = vrot.lane.b32.xlu0 %v1535, 64
    %v1538 = vpop.permute.xlu0 %1537
    %v1540 = vadd.f32 %v1534, %v1538
    %v1541 = vtanh.pop %v1540
    %v1542 = vmul.f32 %v1531, %v1541
    %v1543 = vpack.c.bf16 %v1542, %v1542
    %1545 = vrot.lane.b32.xlu0 %v1476, 64
    %v1546 = vpop.permute.xlu0 %1545
    %v1548 = vsel %vm277, %v1546, 0
    %1550 = vmatprep.subr.bf16.mxu0 %v373
    %1551 = vmatpush1.bf16.msra.mxu0 %v372
    %1552 = vmatprep.subr.bf16.mxu0 %v375
    %1553 = vmatpush1.bf16.msra.mxu0 %v374
    %1554 = vmatprep.subr.bf16.mxu0 %v377
    %1555 = vmatpush1.bf16.msra.mxu0 %v376
    %1556 = vmatprep.subr.bf16.mxu0 %v379
    %1557 = vmatpush1.bf16.msra.mxu0 %v378
    %1558 = vmatprep.subr.bf16.mxu0 0
    %1559 = vmatpush1.bf16.msra.mxu0 0
    %1560 = vmatprep.subr.bf16.mxu0 0
    %1561 = vmatpush1.bf16.msra.mxu0 0
    %1562 = vmatprep.subr.bf16.mxu0 0
    %1563 = vmatpush1.bf16.msra.mxu0 0
    %1564 = vmatprep.subr.bf16.mxu0 0
    %1565 = vmatpush1.bf16.msra.mxu0 0
    %1566 = vmatprep.subr.bf16.mxu0 0
    %1567 = vmatpush1.bf16.msra.mxu0 0
    %1568 = vmatprep.subr.bf16.mxu0 0
    %1569 = vmatpush1.bf16.msra.mxu0 0
    %1570 = vmatprep.subr.bf16.mxu0 0
    %1571 = vmatpush1.bf16.msra.mxu0 0
    %1572 = vmatprep.subr.bf16.mxu0 0
    %1573 = vmatpush1.bf16.msra.mxu0 0
    %1574 = vmatprep.subr.bf16.mxu0 0
    %1575 = vmatpush1.bf16.msra.mxu0 0
    %1576 = vmatprep.subr.bf16.mxu0 0
    %1577 = vmatpush1.bf16.msra.mxu0 0
    %1578 = vmatprep.subr.bf16.mxu0 0
    %1579 = vmatpush1.bf16.msra.mxu0 0
    %1580 = vmatprep.subr.bf16.mxu0 0
    %1581 = vmatpush1.bf16.msra.mxu0 0
    %1582 = vmatprep.mubr.bf16.mxu0 0
    %1583 = vmatmul.mubr.bf16.gmra.mrb[0].mxu0 %v1548
    %v1584 = vpop.f32.mrb[0].mxu0
    %v1585 = vadd.f32 0.0, %v1584
    %v1586 = vpop.f32.mrb[0].mxu0
    %v1587 = vadd.f32 0.0, %v1586
    %v1588 = vpop.f32.mrb[0].mxu0
    %v1589 = vpop.f32.mrb[0].mxu0
    %1590 = vdwg.mxu0
    %1592 = vrot.lane.b32.xlu0 %v1543, 64
    %v1593 = vpop.permute.xlu0 %1592
    %v1595 = vsel %vm277, %v1593, 0
    %1597 = vmatprep.subr.bf16.mxu0 %v457
    %1598 = vmatpush1.bf16.msra.mxu0 %v456
    %1599 = vmatprep.subr.bf16.mxu0 %v459
    %1600 = vmatpush1.bf16.msra.mxu0 %v458
    %1601 = vmatprep.subr.bf16.mxu0 %v461
    %1602 = vmatpush1.bf16.msra.mxu0 %v460
    %1603 = vmatprep.subr.bf16.mxu0 %v463
    %1604 = vmatpush1.bf16.msra.mxu0 %v462
    %1605 = vmatprep.subr.bf16.mxu0 0
    %1606 = vmatpush1.bf16.msra.mxu0 0
    %1607 = vmatprep.subr.bf16.mxu0 0
    %1608 = vmatpush1.bf16.msra.mxu0 0
    %1609 = vmatprep.subr.bf16.mxu0 0
    %1610 = vmatpush1.bf16.msra.mxu0 0
    %1611 = vmatprep.subr.bf16.mxu0 0
    %1612 = vmatpush1.bf16.msra.mxu0 0
    %1613 = vmatprep.subr.bf16.mxu0 0
    %1614 = vmatpush1.bf16.msra.mxu0 0
    %1615 = vmatprep.subr.bf16.mxu0 0
    %1616 = vmatpush1.bf16.msra.mxu0 0
    %1617 = vmatprep.subr.bf16.mxu0 0
    %1618 = vmatpush1.bf16.msra.mxu0 0
    %1619 = vmatprep.subr.bf16.mxu0 0
    %1620 = vmatpush1.bf16.msra.mxu0 0
    %1621 = vmatprep.subr.bf16.mxu0 0
    %1622 = vmatpush1.bf16.msra.mxu0 0
    %1623 = vmatprep.subr.bf16.mxu0 0
    %1624 = vmatpush1.bf16.msra.mxu0 0
    %1625 = vmatprep.subr.bf16.mxu0 0
    %1626 = vmatpush1.bf16.msra.mxu0 0
    %1627 = vmatprep.subr.bf16.mxu0 0
    %1628 = vmatpush1.bf16.msra.mxu0 0
    %1629 = vmatprep.mubr.bf16.mxu0 0
    %1630 = vmatmul.mubr.bf16.gmra.mrb[0].mxu0 %v1595
    %v1631 = vpop.f32.mrb[0].mxu0
    %v1632 = vadd.f32 %v1585, %v1631
    %v1633 = vpop.f32.mrb[0].mxu0
    %v1634 = vadd.f32 %v1587, %v1633
    %v1635 = vpop.f32.mrb[0].mxu0
    %v1636 = vpop.f32.mrb[0].mxu0
    %1637 = vdwg.mxu0
    %v1638 = vadd.f32 %v1632, %v230
    %v1639 = vadd.f32 %v1634, %v234
    %v1640 = vxor.u32 %v1638, 2147483648
    %v1641 = vxor.u32 %v1639, 2147483648
    %v1642 = vmul.f32 %v1640, 1.442695
    %v1643 = vpow.pop %v1642
    %v1644 = vmul.f32 %v1641, 1.442695
    %v1645 = vpow.pop %v1644
    %v1646 = vadd.f32 %v1643, 1.0
    %v1647 = vadd.f32 %v1645, 1.0
    %v1648 = vrcp.pop %v1646
    %v1649 = vmul.f32 1.0, %v1648
    %v1650 = vrcp.pop %v1647
    %v1651 = vmul.f32 1.0, %v1650
    %v1652 = vmul.f32 %v1651, 2.0
    %v1653 = vsub.f32 %v1652, 1.0
    %v1654 = vmul.f32 %v1649, %v1473
    %v1655 = vmul.f32 %v1649, %v1653
    %1657 = vrot.lane.b32.xlu0 %v1655, 64
    %v1658 = vpop.permute.xlu0 %1657
    %v1660 = vadd.f32 %v1654, %v1658
    %v1661 = vtanh.pop %v1660
    %v1662 = vmul.f32 %v1651, %v1661
    %v1663 = vpack.c.bf16 %v1662, %v1662
    %1664 = vmatprep.subr.bf16.mxu0 %v262
    %1665 = vmatpush1.bf16.msra.mxu0 %v261
    %1666 = vmatprep.subr.bf16.mxu0 %v264
    %1667 = vmatpush1.bf16.msra.mxu0 %v263
    %1668 = vmatprep.subr.bf16.mxu0 %v266
    %1669 = vmatpush1.bf16.msra.mxu0 %v265
    %1670 = vmatprep.subr.bf16.mxu0 %v268
    %1671 = vmatpush1.bf16.msra.mxu0 %v267
    %1672 = vmatprep.subr.bf16.mxu0 0
    %1673 = vmatpush1.bf16.msra.mxu0 0
    %1674 = vmatprep.subr.bf16.mxu0 0
    %1675 = vmatpush1.bf16.msra.mxu0 0
    %1676 = vmatprep.subr.bf16.mxu0 0
    %1677 = vmatpush1.bf16.msra.mxu0 0
    %1678 = vmatprep.subr.bf16.mxu0 0
    %1679 = vmatpush1.bf16.msra.mxu0 0
    %1680 = vmatprep.subr.bf16.mxu0 0
    %1681 = vmatpush1.bf16.msra.mxu0 0
    %1682 = vmatprep.subr.bf16.mxu0 0
    %1683 = vmatpush1.bf16.msra.mxu0 0
    %1684 = vmatprep.subr.bf16.mxu0 0
    %1685 = vmatpush1.bf16.msra.mxu0 0
    %1686 = vmatprep.subr.bf16.mxu0 0
    %1687 = vmatpush1.bf16.msra.mxu0 0
    %1688 = vmatprep.subr.bf16.mxu0 0
    %1689 = vmatpush1.bf16.msra.mxu0 0
    %1690 = vmatprep.subr.bf16.mxu0 0
    %1691 = vmatpush1.bf16.msra.mxu0 0
    %1692 = vmatprep.subr.bf16.mxu0 0
    %1693 = vmatpush1.bf16.msra.mxu0 0
    %1694 = vmatprep.subr.bf16.mxu0 0
    %1695 = vmatpush1.bf16.msra.mxu0 0
    %1696 = vmatprep.mubr.bf16.mxu0 0
    %1697 = vmatmul.mubr.bf16.gmra.mrb[0].mxu0 %v1595
    %v1698 = vpop.f32.mrb[0].mxu0
    %v1699 = vadd.f32 0.0, %v1698
    %v1700 = vpop.f32.mrb[0].mxu0
    %v1701 = vadd.f32 0.0, %v1700
    %v1702 = vpop.f32.mrb[0].mxu0
    %v1703 = vpop.f32.mrb[0].mxu0
    %1704 = vdwg.mxu0
    %v1705 = vadd.f32 %v223, %v1699
    %v1706 = vadd.f32 %v224, %v1701
    %v1707 = vxor.u32 %v1705, 2147483648
    %v1708 = vxor.u32 %v1706, 2147483648
    %v1709 = vmul.f32 %v1707, 1.442695
    %v1710 = vpow.pop %v1709
    %v1711 = vmul.f32 %v1708, 1.442695
    %v1712 = vpow.pop %v1711
    %v1713 = vadd.f32 %v1710, 1.0
    %v1714 = vadd.f32 %v1712, 1.0
    %v1715 = vrcp.pop %v1713
    %v1716 = vmul.f32 1.0, %v1715
    %v1717 = vrcp.pop %v1714
    %v1718 = vmul.f32 1.0, %v1717
    %v1719 = vmul.f32 %v1718, 2.0
    %v1720 = vsub.f32 %v1719, 1.0
    %v1721 = vmul.f32 %v1716, %v1540
    %v1722 = vmul.f32 %v1716, %v1720
    %1724 = vrot.lane.b32.xlu0 %v1722, 64
    %v1725 = vpop.permute.xlu0 %1724
    %v1727 = vadd.f32 %v1721, %v1725
    %v1728 = vtanh.pop %v1727
    %v1729 = vmul.f32 %v1718, %v1728
    %v1730 = vpack.c.bf16 %v1729, %v1729
    %1732 = vrot.lane.b32.xlu0 %v1663, 64
    %v1733 = vpop.permute.xlu0 %1732
    %v1735 = vsel %vm277, %v1733, 0
    %1737 = vmatprep.subr.bf16.mxu0 %v373
    %1738 = vmatpush1.bf16.msra.mxu0 %v372
    %1739 = vmatprep.subr.bf16.mxu0 %v375
    %1740 = vmatpush1.bf16.msra.mxu0 %v374
    %1741 = vmatprep.subr.bf16.mxu0 %v377
    %1742 = vmatpush1.bf16.msra.mxu0 %v376
    %1743 = vmatprep.subr.bf16.mxu0 %v379
    %1744 = vmatpush1.bf16.msra.mxu0 %v378
    %1745 = vmatprep.subr.bf16.mxu0 0
    %1746 = vmatpush1.bf16.msra.mxu0 0
    %1747 = vmatprep.subr.bf16.mxu0 0
    %1748 = vmatpush1.bf16.msra.mxu0 0
    %1749 = vmatprep.subr.bf16.mxu0 0
    %1750 = vmatpush1.bf16.msra.mxu0 0
    %1751 = vmatprep.subr.bf16.mxu0 0
    %1752 = vmatpush1.bf16.msra.mxu0 0
    %1753 = vmatprep.subr.bf16.mxu0 0
    %1754 = vmatpush1.bf16.msra.mxu0 0
    %1755 = vmatprep.subr.bf16.mxu0 0
    %1756 = vmatpush1.bf16.msra.mxu0 0
    %1757 = vmatprep.subr.bf16.mxu0 0
    %1758 = vmatpush1.bf16.msra.mxu0 0
    %1759 = vmatprep.subr.bf16.mxu0 0
    %1760 = vmatpush1.bf16.msra.mxu0 0
    %1761 = vmatprep.subr.bf16.mxu0 0
    %1762 = vmatpush1.bf16.msra.mxu0 0
    %1763 = vmatprep.subr.bf16.mxu0 0
    %1764 = vmatpush1.bf16.msra.mxu0 0
    %1765 = vmatprep.subr.bf16.mxu0 0
    %1766 = vmatpush1.bf16.msra.mxu0 0
    %1767 = vmatprep.subr.bf16.mxu0 0
    %1768 = vmatpush1.bf16.msra.mxu0 0
    %1769 = vmatprep.mubr.bf16.mxu0 0
    %1770 = vmatmul.mubr.bf16.gmra.mrb[0].mxu0 %v1735
    %v1771 = vpop.f32.mrb[0].mxu0
    %v1772 = vadd.f32 0.0, %v1771
    %v1773 = vpop.f32.mrb[0].mxu0
    %v1774 = vadd.f32 0.0, %v1773
    %v1775 = vpop.f32.mrb[0].mxu0
    %v1776 = vpop.f32.mrb[0].mxu0
    %1777 = vdwg.mxu0
    %1779 = vrot.lane.b32.xlu0 %v1730, 64
    %v1780 = vpop.permute.xlu0 %1779
    %v1782 = vsel %vm277, %v1780, 0
    %1784 = vmatprep.subr.bf16.mxu0 %v457
    %1785 = vmatpush1.bf16.msra.mxu0 %v456
    %1786 = vmatprep.subr.bf16.mxu0 %v459
    %1787 = vmatpush1.bf16.msra.mxu0 %v458
    %1788 = vmatprep.subr.bf16.mxu0 %v461
    %1789 = vmatpush1.bf16.msra.mxu0 %v460
    %1790 = vmatprep.subr.bf16.mxu0 %v463
    %1791 = vmatpush1.bf16.msra.mxu0 %v462
    %1792 = vmatprep.subr.bf16.mxu0 0
    %1793 = vmatpush1.bf16.msra.mxu0 0
    %1794 = vmatprep.subr.bf16.mxu0 0
    %1795 = vmatpush1.bf16.msra.mxu0 0
    %1796 = vmatprep.subr.bf16.mxu0 0
    %1797 = vmatpush1.bf16.msra.mxu0 0
    %1798 = vmatprep.subr.bf16.mxu0 0
    %1799 = vmatpush1.bf16.msra.mxu0 0
    %1800 = vmatprep.subr.bf16.mxu0 0
    %1801 = vmatpush1.bf16.msra.mxu0 0
    %1802 = vmatprep.subr.bf16.mxu0 0
    %1803 = vmatpush1.bf16.msra.mxu0 0
    %1804 = vmatprep.subr.bf16.mxu0 0
    %1805 = vmatpush1.bf16.msra.mxu0 0
    %1806 = vmatprep.subr.bf16.mxu0 0
    %1807 = vmatpush1.bf16.msra.mxu0 0
    %1808 = vmatprep.subr.bf16.mxu0 0
    %1809 = vmatpush1.bf16.msra.mxu0 0
    %1810 = vmatprep.subr.bf16.mxu0 0
    %1811 = vmatpush1.bf16.msra.mxu0 0
    %1812 = vmatprep.subr.bf16.mxu0 0
    %1813 = vmatpush1.bf16.msra.mxu0 0
    %1814 = vmatprep.subr.bf16.mxu0 0
    %1815 = vmatpush1.bf16.msra.mxu0 0
    %1816 = vmatprep.mubr.bf16.mxu0 0
    %1817 = vmatmul.mubr.bf16.gmra.mrb[0].mxu0 %v1782
    %v1818 = vpop.f32.mrb[0].mxu0
    %v1819 = vadd.f32 %v1772, %v1818
    %v1820 = vpop.f32.mrb[0].mxu0
    %v1821 = vadd.f32 %v1774, %v1820
    %v1822 = vpop.f32.mrb[0].mxu0
    %v1823 = vpop.f32.mrb[0].mxu0
    %1824 = vdwg.mxu0
    %v1825 = vadd.f32 %v1819, %v230
    %v1826 = vadd.f32 %v1821, %v234
    %v1827 = vxor.u32 %v1825, 2147483648
    %v1828 = vxor.u32 %v1826, 2147483648
    %v1829 = vmul.f32 %v1827, 1.442695
    %v1830 = vpow.pop %v1829
    %v1831 = vmul.f32 %v1828, 1.442695
    %v1832 = vpow.pop %v1831
    %v1833 = vadd.f32 %v1830, 1.0
    %v1834 = vadd.f32 %v1832, 1.0
    %v1835 = vrcp.pop %v1833
    %v1836 = vmul.f32 1.0, %v1835
    %v1837 = vrcp.pop %v1834
    %v1838 = vmul.f32 1.0, %v1837
    %v1839 = vmul.f32 %v1838, 2.0
    %v1840 = vsub.f32 %v1839, 1.0
    %v1841 = vmul.f32 %v1836, %v1660
    %v1842 = vmul.f32 %v1836, %v1840
    %1844 = vrot.lane.b32.xlu0 %v1842, 64
    %v1845 = vpop.permute.xlu0 %1844
    %v1847 = vadd.f32 %v1841, %v1845
    %v1848 = vtanh.pop %v1847
    %v1849 = vmul.f32 %v1838, %v1848
    %v1850 = vld [vmem:[%s7] sm:$0x1]
    %v1852 = vlaneseq
    %v1853 = vshrl.u32 %v1852, 7
    %v1854 = vsub.s32 0, %v1853
    %v1855 = vrot.slane %v1850, %v1854
    %1856 = vrot.lane.b32.xlu0 %v1855, 64
    %v1857 = vpop.permute.xlu0 %1856
    %v1859 = vmul.f32 %v1849, %v1857
    %1861 = vrot.lane.b32.xlu0 %v1859, 64
    %v1862 = vpop.permute.xlu0 %1861
    %v1864 = vsel %vm277, %v1862, 0.0
    %1865 = vadd.xlane.f32.xlu0 %v1864
    %v1866 = vpop.xlane.xlu0 %1865
    %v1867 = vld [vmem:[#allocation2] sm:$0x1]
    %v1869 = vlaneseq
    %v1870 = vshrl.u32 %v1869, 7
    %v1871 = vsub.s32 0, %v1870
    %v1872 = vrot.slane %v1867, %v1871
    %v1874 = vadd.f32 %v1866, %v1872
    %vm1875 = vcmask 7168
    %1876 = vst.msk [vmem:[%s9] sm:$0xff] %vm1875, %v1874
    // Predicated region
    $region54: #{tpu_custom_call.1} parent=1 // pred_check
      _
    $region55: #{tpu_custom_call.1} parent=1 // pred_check_branch
      %1878 = sbr.rel (0) target = $region57
    $region56: #{tpu_custom_call.1} parent=1 // pred_region
      _
    $region57: #{tpu_custom_call.1} parent=1 // pred_fallthru
      _
    // Predicated region
    $region58: #{tpu_custom_call.1} parent=1 // pred_check
      _
    $region59: #{tpu_custom_call.1} parent=1 // pred_check_branch
      %1880 = sbr.rel (0) target = $region61
    $region60: #{tpu_custom_call.1} parent=1 // pred_region
      _
    $region61: #{tpu_custom_call.1} parent=1 // pred_fallthru
      _
    %1881 = vsyncpa [#allocation4], 1
    %1882 = vsyncpa [#allocation6], 1
    %1883 = vsyncpa [#allocation9], 1

</llo_original>
